<compile_context>
chip_gen: v7x
topology: tpu7x:2x2x1
jax: 0.10.0
libtpu: 0.0.40
codegen_flags: <defaults>
</compile_context>

<pallas_src>
import functools

import jax
import jax.numpy as jnp
from jax.experimental import pallas as pl
from jax.experimental.pallas import tpu as pltpu

BN_EPS = 1e-5
LEAKY_SLOPE = 0.2
IN_F, H1, H2 = 784, 512, 256
VMEM_LIMIT = 48 * 1024 * 1024  # safe on v5e/v6e (128 MiB) and under v7x's 64 MiB


def _leaky(h):
    # max(h, 0.2*h) == LeakyReLU(0.2) for slope in (0,1); one vmul + one vmax.
    return jnp.maximum(h, LEAKY_SLOPE * h)


def _bn_from_stats(h, s, ss, inv_b):
    # BatchNorm1d training mode, affine=False, biased variance, from precomputed
    # sum / sum-of-squares. Guard the one-pass variance against cancellation.
    mean = s * inv_b
    var = jnp.maximum(ss * inv_b - mean * mean, 0.0)
    return (h - mean) * jax.lax.rsqrt(var + BN_EPS)


# ----------------------------------------------------------------------------
# Fused single-block kernel (small / medium B: everything resident in VMEM).
# ----------------------------------------------------------------------------
def fused_kernel(x_ref, w1_ref, w2_ref, w3_ref, o_ref, *, inv_b):
    def bn_leaky(h):
        s = jnp.sum(h, axis=0, keepdims=True)
        ss = jnp.sum(h * h, axis=0, keepdims=True)
        return _leaky(_bn_from_stats(h, s, ss, inv_b))

    # layer1: Linear(784,512) -> BN -> LeakyReLU   (bf16 MXU, f32 accumulate)
    h1 = jnp.dot(x_ref[...], w1_ref[...], preferred_element_type=jnp.float32)
    h1 = bn_leaky(h1)
    # layer2: Linear(512,256) -> BN -> LeakyReLU
    h2 = jnp.dot(h1.astype(jnp.bfloat16), w2_ref[...],
                 preferred_element_type=jnp.float32)
    h2 = bn_leaky(h2)
    # layer3: Linear(256,1) as VPU multiply + XLU lane reduce; exact sigmoid.
    logits = jnp.sum(h2 * w3_ref[...], axis=-1, keepdims=True)
    o_ref[...] = 1.0 / (1.0 + jnp.exp(-logits))


def _forward_fused(x2d, w1, w2, w3):
    B = x2d.shape[0]
    full = lambda shape: pl.BlockSpec(shape, lambda: (0,) * len(shape))
    flops = 2 * B * (IN_F * H1 + H1 * H2) + 2 * B * H2
    bytes_accessed = (x2d.size * 2 + w1.size * 2 + w2.size * 2
                      + w3.size * 4 + B * 4)
    return pl.pallas_call(
        functools.partial(fused_kernel, inv_b=1.0 / B),
        out_shape=jax.ShapeDtypeStruct((B, 1), jnp.float32),
        in_specs=[full(x2d.shape), full(w1.shape), full(w2.shape), full(w3.shape)],
        out_specs=full((B, 1)),
        compiler_params=pltpu.CompilerParams(vmem_limit_bytes=VMEM_LIMIT),
        cost_estimate=pl.CostEstimate(
            flops=flops, transcendentals=2 * B + H1 + H2,
            bytes_accessed=bytes_accessed),
    )(x2d, w1, w2, w3)


# ----------------------------------------------------------------------------
# Tiled path (large B): batch grid, resident weights, cross-tile BN statistics.
# ----------------------------------------------------------------------------
def stage1_kernel(x_ref, w1_ref, h1_ref, s_ref, ss_ref):
    # matmul per batch tile + accumulate BN1 sum / sumsq across tiles.
    @pl.when(pl.program_id(0) == 0)
    def _():
        s_ref[...] = jnp.zeros_like(s_ref)
        ss_ref[...] = jnp.zeros_like(ss_ref)

    h = jnp.dot(x_ref[...], w1_ref[...], preferred_element_type=jnp.float32)
    h1_ref[...] = h
    s_ref[...] += jnp.sum(h, axis=0, keepdims=True)
    ss_ref[...] += jnp.sum(h * h, axis=0, keepdims=True)


def stage2_kernel(h1p_ref, s1_ref, ss1_ref, w2_ref, h2_ref, s2_ref, ss2_ref, *, inv_b):
    # normalize layer1, LeakyReLU, matmul layer2 + accumulate BN2 stats.
    @pl.when(pl.program_id(0) == 0)
    def _():
        s2_ref[...] = jnp.zeros_like(s2_ref)
        ss2_ref[...] = jnp.zeros_like(ss2_ref)

    h1 = _leaky(_bn_from_stats(h1p_ref[...], s1_ref[...], ss1_ref[...], inv_b))
    h2 = jnp.dot(h1.astype(jnp.bfloat16), w2_ref[...],
                 preferred_element_type=jnp.float32)
    h2_ref[...] = h2
    s2_ref[...] += jnp.sum(h2, axis=0, keepdims=True)
    ss2_ref[...] += jnp.sum(h2 * h2, axis=0, keepdims=True)


def stage3_kernel(h2p_ref, s2_ref, ss2_ref, w3_ref, o_ref, *, inv_b):
    # normalize layer2, LeakyReLU, 256->1 head (VPU mul + XLU lane reduce), sigmoid.
    h2 = _leaky(_bn_from_stats(h2p_ref[...], s2_ref[...], ss2_ref[...], inv_b))
    logits = jnp.sum(h2 * w3_ref[...], axis=-1, keepdims=True)
    o_ref[...] = 1.0 / (1.0 + jnp.exp(-logits))


def _pick_batch_tile(B, max_tile):
    # Largest divisor of B that is <= max_tile and sublane aligned (multiple of 8).
    for t in range(min(max_tile, B), 0, -1):
        if t % 8 == 0 and B % t == 0:
            return t
    return None


def _forward_tiled(x2d, w1, w2, w3, *, batch_tile):
    B = x2d.shape[0]
    tB = _pick_batch_tile(B, batch_tile)
    if tB is None:
        return _forward_fused(x2d, w1, w2, w3)  # tiny / awkward B: fused fallback
    grid = (B // tB,)
    inv_b = 1.0 / B

    resident = lambda shape: pl.BlockSpec(shape, lambda i: (0, 0))
    tiled = lambda f: pl.BlockSpec((tB, f), lambda i: (i, 0))
    params_seq = pltpu.CompilerParams(dimension_semantics=("arbitrary",),
                                      vmem_limit_bytes=VMEM_LIMIT)
    params_par = pltpu.CompilerParams(dimension_semantics=("parallel",),
                                      vmem_limit_bytes=VMEM_LIMIT)

    # --- stage 1: x @ W1 + BN1 stats ---------------------------------------
    h1_pre, s1, ss1 = pl.pallas_call(
        stage1_kernel,
        grid=grid,
        in_specs=[tiled(IN_F), resident(w1.shape)],
        out_shape=(jax.ShapeDtypeStruct((B, H1), jnp.float32),
                   jax.ShapeDtypeStruct((1, H1), jnp.float32),
                   jax.ShapeDtypeStruct((1, H1), jnp.float32)),
        out_specs=(tiled(H1), resident((1, H1)), resident((1, H1))),
        compiler_params=params_seq,
        cost_estimate=pl.CostEstimate(
            flops=2 * B * IN_F * H1 + 4 * B * H1,
            transcendentals=0,
            bytes_accessed=x2d.size * 2 + w1.size * 2 + (B + 2) * H1 * 4),
    )(x2d, w1)

    # --- stage 2: BN1 -> LeakyReLU -> @ W2 + BN2 stats ----------------------
    h2_pre, s2, ss2 = pl.pallas_call(
        functools.partial(stage2_kernel, inv_b=inv_b),
        grid=grid,
        in_specs=[tiled(H1), resident((1, H1)), resident((1, H1)),
                  resident(w2.shape)],
        out_shape=(jax.ShapeDtypeStruct((B, H2), jnp.float32),
                   jax.ShapeDtypeStruct((1, H2), jnp.float32),
                   jax.ShapeDtypeStruct((1, H2), jnp.float32)),
        out_specs=(tiled(H2), resident((1, H2)), resident((1, H2))),
        compiler_params=params_seq,
        cost_estimate=pl.CostEstimate(
            flops=2 * B * H1 * H2 + 8 * B * H1 + 4 * B * H2,
            transcendentals=H1,
            bytes_accessed=B * H1 * 4 + w2.size * 2 + (B + 2) * H2 * 4 + 2 * H1 * 4),
    )(h1_pre, s1, ss1, w2)

    # --- stage 3: BN2 -> LeakyReLU -> head -> sigmoid (parallel over tiles) --
    out = pl.pallas_call(
        functools.partial(stage3_kernel, inv_b=inv_b),
        grid=grid,
        in_specs=[tiled(H2), resident((1, H2)), resident((1, H2)),
                  resident(w3.shape)],
        out_shape=jax.ShapeDtypeStruct((B, 1), jnp.float32),
        out_specs=pl.BlockSpec((tB, 1), lambda i: (i, 0)),
        compiler_params=params_par,
        cost_estimate=pl.CostEstimate(
            flops=8 * B * H2 + 2 * B * H2,
            transcendentals=H2 + 2 * B,
            bytes_accessed=B * H2 * 4 + w3.size * 4 + 2 * H2 * 4 + B * 4),
    )(h2_pre, s2, ss2, w3)
    return out


# ----------------------------------------------------------------------------
# Wrapper
# ----------------------------------------------------------------------------
def temp_discriminator(x, w1, w2, w3, *, mode="auto", batch_tile=512,
                       fused_max_rows=1024):
    """x: (B, ...) with prod(...) == 784 (ideally already bfloat16).
    w1: (784,512) bf16, w2: (512,256) bf16, w3: (1,256) f32. Returns (B,1) f32."""
    B = x.shape[0]
    x2d = x.reshape(B, -1)
    assert x2d.shape[1] == IN_F
    assert w1.shape == (IN_F, H1) and w2.shape == (H1, H2) and w3.shape == (1, H2)
    if x2d.dtype != jnp.bfloat16:
        # Prefer producers to hand the kernel bf16 directly (halves the x DMA);
        # this cast is a fallback for f32 callers.
        x2d = x2d.astype(jnp.bfloat16)

    if mode == "auto":
        mode = "fused" if B <= fused_max_rows else "tiled"
    if mode == "fused":
        return _forward_fused(x2d, w1, w2, w3)
    return _forward_tiled(x2d, w1, w2, w3, batch_tile=batch_tile)


def init_params(key):
    """w1/w2 stored pre-transposed as (in, out) bf16 (W.T of nn.Linear's (out,in));
    w3 stored as a (1, 256) f32 row for the lane-reduce head."""
    k1, k2, k3 = jax.random.split(key, 3)

    def linear_init(k, fan_in, fan_out):
        bound = 1.0 / jnp.sqrt(fan_in)  # nn.Linear default U(-1/sqrt(fan_in), ...)
        return jax.random.uniform(k, (fan_in, fan_out), jnp.float32,
                                  minval=-bound, maxval=bound)

    w1 = linear_init(k1, IN_F, H1).astype(jnp.bfloat16)
    w2 = linear_init(k2, H1, H2).astype(jnp.bfloat16)
    w3 = linear_init(k3, H2, 1).reshape(1, H2)
    return w1, w2, w3


def reference(x, w1, w2, w3):
    """Pure-JAX reference with the same (bf16-weight, f32-accumulate) math."""
    B = x.shape[0]
    h = x.reshape(B, -1).astype(jnp.bfloat16)

    def bn_leaky(h):
        mean = jnp.mean(h, axis=0, keepdims=True)
        var = jnp.mean((h - mean) ** 2, axis=0, keepdims=True)
        h = (h - mean) * jax.lax.rsqrt(var + BN_EPS)
        return jnp.maximum(h, LEAKY_SLOPE * h)

    h1 = bn_leaky(jnp.dot(h, w1, preferred_element_type=jnp.float32))
    h2 = bn_leaky(jnp.dot(h1.astype(jnp.bfloat16), w2,
                          preferred_element_type=jnp.float32))
    logits = jnp.sum(h2 * w3, axis=-1, keepdims=True)
    return jax.nn.sigmoid(logits)


if __name__ == "__main__":
    key = jax.random.PRNGKey(0)
    k_x, k_p = jax.random.split(key)
    w1, w2, w3 = init_params(k_p)

    # Fused single-block path (small batch, everything VMEM-resident).
    B_small = 64
    x_small = jax.random.normal(k_x, (B_small, 1, 28, 28),
                                dtype=jnp.float32).astype(jnp.bfloat16)
    out_small = jax.block_until_ready(temp_discriminator(x_small, w1, w2, w3))
    ref_small = reference(x_small, w1, w2, w3)
    assert out_small.shape == (B_small, 1)
    assert bool(jnp.all(jnp.isfinite(out_small)))
    assert bool(jnp.allclose(out_small, ref_small, atol=5e-3, rtol=5e-3))

    # Tiled path (batch grid, resident weights, cross-tile BN statistics).
    B_big = 256
    x_big = jax.random.normal(k_x, (B_big, 1, 28, 28),
                              dtype=jnp.float32).astype(jnp.bfloat16)
    out_big = jax.block_until_ready(
        temp_discriminator(x_big, w1, w2, w3, mode="tiled", batch_tile=128))
    ref_big = reference(x_big, w1, w2, w3)
    assert out_big.shape == (B_big, 1)
    assert bool(jnp.all(jnp.isfinite(out_big)))
    assert bool(jnp.all((out_big >= 0.0) & (out_big <= 1.0)))
    assert bool(jnp.allclose(out_big, ref_big, atol=5e-3, rtol=5e-3))

    print("KERNEL_OK")
</pallas_src>

<mosaic_0001>
module attributes {stable_mosaic.version = 11 : i64} {
  func.func @fused_kernel(%arg0: memref<64x784xbf16, #tpu.memory_space<vmem>>, %arg1: memref<784x512xbf16, #tpu.memory_space<vmem>>, %arg2: memref<512x256xbf16, #tpu.memory_space<vmem>>, %arg3: memref<1x256xf32, #tpu.memory_space<vmem>>, %arg4: memref<64x1xf32, #tpu.memory_space<vmem>>) attributes {dimension_semantics = [], scalar_prefetch = 0 : i64, scratch_operands = 0 : i64, tpu.core_type = #tpu.core_type<tc>} {
    %c0 = arith.constant 0 : index
    %c0_0 = arith.constant 0 : index
    %0 = vector.load %arg0[%c0, %c0_0] : memref<64x784xbf16, #tpu.memory_space<vmem>>, vector<64x784xbf16>
    %c0_1 = arith.constant 0 : index
    %c0_2 = arith.constant 0 : index
    %1 = vector.load %arg1[%c0_1, %c0_2] : memref<784x512xbf16, #tpu.memory_space<vmem>>, vector<784x512xbf16>
    %cst = arith.constant dense<0.000000e+00> : vector<64x512xf32>
    %2 = tpu.matmul %0, %1, %cst {dimension_numbers = #tpu.dot_dimension_numbers<[1], [0], [0], [1], [0, 0, 1, 1], [], []>} : vector<64x784xbf16>, vector<784x512xbf16>, vector<64x512xf32> -> vector<64x512xf32>
    %cst_3 = arith.constant dense<0.000000e+00> : vector<512xf32>
    %3 = vector.multi_reduction <add>, %2, %cst_3 [0] : vector<64x512xf32> to vector<512xf32>
    %4 = vector.shape_cast %3 : vector<512xf32> to vector<1x512xf32>
    %5 = arith.mulf %2, %2 : vector<64x512xf32>
    %cst_4 = arith.constant dense<0.000000e+00> : vector<512xf32>
    %6 = vector.multi_reduction <add>, %5, %cst_4 [0] : vector<64x512xf32> to vector<512xf32>
    %7 = vector.shape_cast %6 : vector<512xf32> to vector<1x512xf32>
    %cst_5 = arith.constant 1.562500e-02 : f32
    %8 = vector.broadcast %cst_5 : f32 to vector<1x512xf32>
    %9 = arith.mulf %4, %8 : vector<1x512xf32>
    %cst_6 = arith.constant 1.562500e-02 : f32
    %10 = vector.broadcast %cst_6 : f32 to vector<1x512xf32>
    %11 = arith.mulf %7, %10 : vector<1x512xf32>
    %12 = arith.mulf %9, %9 : vector<1x512xf32>
    %13 = arith.subf %11, %12 : vector<1x512xf32>
    %cst_7 = arith.constant 0.000000e+00 : f32
    %14 = vector.broadcast %cst_7 : f32 to vector<1x512xf32>
    %15 = arith.maximumf %13, %14 : vector<1x512xf32>
    %16 = vector.broadcast %9 : vector<1x512xf32> to vector<64x512xf32>
    %17 = arith.subf %2, %16 : vector<64x512xf32>
    %cst_8 = arith.constant 9.99999974E-6 : f32
    %18 = vector.broadcast %cst_8 : f32 to vector<1x512xf32>
    %19 = arith.addf %15, %18 : vector<1x512xf32>
    %20 = math.rsqrt %19 : vector<1x512xf32>
    %21 = vector.broadcast %20 : vector<1x512xf32> to vector<64x512xf32>
    %22 = arith.mulf %17, %21 : vector<64x512xf32>
    %cst_9 = arith.constant 2.000000e-01 : f32
    %23 = vector.broadcast %cst_9 : f32 to vector<64x512xf32>
    %24 = arith.mulf %23, %22 : vector<64x512xf32>
    %25 = arith.maximumf %22, %24 : vector<64x512xf32>
    %26 = arith.truncf %25 : vector<64x512xf32> to vector<64x512xbf16>
    %c0_10 = arith.constant 0 : index
    %c0_11 = arith.constant 0 : index
    %27 = vector.load %arg2[%c0_10, %c0_11] : memref<512x256xbf16, #tpu.memory_space<vmem>>, vector<512x256xbf16>
    %cst_12 = arith.constant dense<0.000000e+00> : vector<64x256xf32>
    %28 = tpu.matmul %26, %27, %cst_12 {dimension_numbers = #tpu.dot_dimension_numbers<[1], [0], [0], [1], [0, 0, 1, 1], [], []>} : vector<64x512xbf16>, vector<512x256xbf16>, vector<64x256xf32> -> vector<64x256xf32>
    %cst_13 = arith.constant dense<0.000000e+00> : vector<256xf32>
    %29 = vector.multi_reduction <add>, %28, %cst_13 [0] : vector<64x256xf32> to vector<256xf32>
    %30 = vector.shape_cast %29 : vector<256xf32> to vector<1x256xf32>
    %31 = arith.mulf %28, %28 : vector<64x256xf32>
    %cst_14 = arith.constant dense<0.000000e+00> : vector<256xf32>
    %32 = vector.multi_reduction <add>, %31, %cst_14 [0] : vector<64x256xf32> to vector<256xf32>
    %33 = vector.shape_cast %32 : vector<256xf32> to vector<1x256xf32>
    %cst_15 = arith.constant 1.562500e-02 : f32
    %34 = vector.broadcast %cst_15 : f32 to vector<1x256xf32>
    %35 = arith.mulf %30, %34 : vector<1x256xf32>
    %cst_16 = arith.constant 1.562500e-02 : f32
    %36 = vector.broadcast %cst_16 : f32 to vector<1x256xf32>
    %37 = arith.mulf %33, %36 : vector<1x256xf32>
    %38 = arith.mulf %35, %35 : vector<1x256xf32>
    %39 = arith.subf %37, %38 : vector<1x256xf32>
    %cst_17 = arith.constant 0.000000e+00 : f32
    %40 = vector.broadcast %cst_17 : f32 to vector<1x256xf32>
    %41 = arith.maximumf %39, %40 : vector<1x256xf32>
    %42 = vector.broadcast %35 : vector<1x256xf32> to vector<64x256xf32>
    %43 = arith.subf %28, %42 : vector<64x256xf32>
    %cst_18 = arith.constant 9.99999974E-6 : f32
    %44 = vector.broadcast %cst_18 : f32 to vector<1x256xf32>
    %45 = arith.addf %41, %44 : vector<1x256xf32>
    %46 = math.rsqrt %45 : vector<1x256xf32>
    %47 = vector.broadcast %46 : vector<1x256xf32> to vector<64x256xf32>
    %48 = arith.mulf %43, %47 : vector<64x256xf32>
    %cst_19 = arith.constant 2.000000e-01 : f32
    %49 = vector.broadcast %cst_19 : f32 to vector<64x256xf32>
    %50 = arith.mulf %49, %48 : vector<64x256xf32>
    %51 = arith.maximumf %48, %50 : vector<64x256xf32>
    %c0_20 = arith.constant 0 : index
    %c0_21 = arith.constant 0 : index
    %52 = vector.load %arg3[%c0_20, %c0_21] : memref<1x256xf32, #tpu.memory_space<vmem>>, vector<1x256xf32>
    %53 = vector.broadcast %52 : vector<1x256xf32> to vector<64x256xf32>
    %54 = arith.mulf %51, %53 : vector<64x256xf32>
    %cst_22 = arith.constant dense<0.000000e+00> : vector<64xf32>
    %55 = vector.multi_reduction <add>, %54, %cst_22 [1] : vector<64x256xf32> to vector<64xf32>
    %56 = vector.shape_cast %55 : vector<64xf32> to vector<64x1xf32>
    %cst_23 = arith.constant 0.000000e+00 : f32
    %57 = vector.broadcast %cst_23 : f32 to vector<64x1xf32>
    %58 = arith.subf %57, %56 : vector<64x1xf32>
    %59 = math.exp %58 : vector<64x1xf32>
    %cst_24 = arith.constant 1.000000e+00 : f32
    %60 = vector.broadcast %cst_24 : f32 to vector<64x1xf32>
    %61 = arith.addf %60, %59 : vector<64x1xf32>
    %cst_25 = arith.constant 1.000000e+00 : f32
    %62 = vector.broadcast %cst_25 : f32 to vector<64x1xf32>
    %63 = arith.divf %62, %61 : vector<64x1xf32>
    %c0_26 = arith.constant 0 : index
    %c0_27 = arith.constant 0 : index
    %64 = vector.load %arg4[%c0_26, %c0_27] : memref<64x1xf32, #tpu.memory_space<vmem>>, vector<64x1xf32>
    tpu.vector_store %arg4[%c0_26, %c0_27], %63 {strides = array<i32>} : memref<64x1xf32, #tpu.memory_space<vmem>>, vector<64x1xf32>,
    return
  }
}

</mosaic_0001>

<llo_original>
// kernel: tpu_custom_call.1
$region0: #{tpu_custom_call.1}
  #allocation0 [shape = 'u32[]', space=smem, size = 0x4, offset = 0x4, fixed_abs, tag = 'smem constant byte address 0x4 - core index']
  #allocation1 [shape = 'u32[144,128]{1,0:T(1,128)}', space=vmem, size = 0x12000, scoped, tag = 'internal scratch']
  %s0 = inlined_call_operand.hbm [shape: bf16[64,784], index: 0, kind: input, shape index: {}]
  %s1 = inlined_call_operand.hbm [shape: bf16[784,512], index: 1, kind: input, shape index: {}]
  %s2 = inlined_call_operand.hbm [shape: bf16[512,256], index: 2, kind: input, shape index: {}]
  %s3 = inlined_call_operand.vmem [shape: f32[1,256], index: 3, kind: input, shape index: {}]
  %s4 = inlined_call_operand.vmem [shape: f32[64,1], index: 4, kind: output, shape index: {}]
  %s5 = sld [smem:[#allocation0]]
  $region38: #{tpu_custom_call.1} parent=0
    _
  %s7 = ssub.s32 1, %s5
  %s8 = scalar_select 0, %s7, %s5
  $region1: #{tpu_custom_call.1} parent=0
    #allocation2 [shape = 'u8[114688]{0}', space=vmem, size = 0x1c000, scoped, tag = 'input window, operand 0, single buffered']
    #allocation3 [shape = 's32[1]{0}', space=sflag, size = 0x4, scoped, tag = 'scoped memory for tpu_custom_call.1']
    #allocation4 [shape = 'u8[802816]{0}', space=vmem, size = 0xc4000, scoped, tag = 'input window, operand 1, single buffered']
    #allocation5 [shape = 's32[1]{0}', space=sflag, size = 0x4, scoped, tag = 'scoped memory for tpu_custom_call.1']
    #allocation6 [shape = 'u8[262144]{0}', space=vmem, size = 0x40000, scoped, tag = 'input window, operand 2, single buffered']
    %9 = vsyncpa [#allocation3], 0
    %10 = vsyncpa [#allocation5], 0
    // Predicated region
    $region2: #{tpu_custom_call.1} parent=1 // pred_check
      _
    $region3: #{tpu_custom_call.1} parent=1 // pred_check_branch
      %12 = sbr.rel (0) target = $region5
    $region4: #{tpu_custom_call.1} parent=1 // pred_region
      %s14 = ssub.s32 3584, 3584
      %15 = vsyncadd [#allocation3], %s14
      %s16 = sshll.u32 [#allocation2], 4
      %s17 = int_to_ptr.vmem [resolvable:$true] %s16
      %22 = dma.hbm_to_vmem [thread:$0]  %s0, 3584, %s17, [#allocation3], 448, 448, 28
    $region5: #{tpu_custom_call.1} parent=1 // pred_fallthru
      _
    // Predicated region
    $region6: #{tpu_custom_call.1} parent=1 // pred_check
      _
    $region7: #{tpu_custom_call.1} parent=1 // pred_check_branch
      %24 = sbr.rel (0) target = $region9
    $region8: #{tpu_custom_call.1} parent=1 // pred_region
      %s26 = ssub.s32 25088, 25088
      %27 = vsyncadd [#allocation5], %s26
      %s28 = sshll.u32 [#allocation4], 4
      %s29 = int_to_ptr.vmem [resolvable:$true] %s28
      %34 = dma.hbm_to_vmem [thread:$0]  %s1, 25088, %s29, [#allocation5], 256, 256, 16
    $region9: #{tpu_custom_call.1} parent=1 // pred_fallthru
      _
    // Predicated region
    $region10: #{tpu_custom_call.1} parent=1 // pred_check
      _
    $region11: #{tpu_custom_call.1} parent=1 // pred_check_branch
      %36 = sbr.rel (0) target = $region13
    $region12: #{tpu_custom_call.1} parent=1 // pred_region
      %s38 = ssub.s32 8192, 8192
      %39 = vsyncadd [#allocation5], %s38
      %s40 = sshll.u32 [#allocation6], 4
      %s41 = int_to_ptr.vmem [resolvable:$true] %s40
      %46 = dma.hbm_to_vmem [thread:$0]  %s2, 8192, %s41, [#allocation5], 128, 128, 8
    $region13: #{tpu_custom_call.1} parent=1 // pred_fallthru
      _
    // Predicated region
    $region14: #{tpu_custom_call.1} parent=1 // pred_check
      _
    $region15: #{tpu_custom_call.1} parent=1 // pred_check_branch
      %48 = sbr.rel (0) target = $region17
    $region16: #{tpu_custom_call.1} parent=1 // pred_region
      _
    $region17: #{tpu_custom_call.1} parent=1 // pred_fallthru
      _
    // Predicated region
    $region18: #{tpu_custom_call.1} parent=1 // pred_check
      _
    $region19: #{tpu_custom_call.1} parent=1 // pred_check_branch
      %50 = sbr.rel (0) target = $region21
    $region20: #{tpu_custom_call.1} parent=1 // pred_region
      %51 = dma.done [#allocation3], 3584
    $region21: #{tpu_custom_call.1} parent=1 // pred_fallthru
      _
    // Predicated region
    $region22: #{tpu_custom_call.1} parent=1 // pred_check
      _
    $region23: #{tpu_custom_call.1} parent=1 // pred_check_branch
      %53 = sbr.rel (0) target = $region25
    $region24: #{tpu_custom_call.1} parent=1 // pred_region
      %54 = dma.done [#allocation5], 25088
    $region25: #{tpu_custom_call.1} parent=1 // pred_fallthru
      _
    // Predicated region
    $region26: #{tpu_custom_call.1} parent=1 // pred_check
      _
    $region27: #{tpu_custom_call.1} parent=1 // pred_check_branch
      %56 = sbr.rel (0) target = $region29
    $region28: #{tpu_custom_call.1} parent=1 // pred_region
      %57 = dma.done [#allocation5], 8192
    $region29: #{tpu_custom_call.1} parent=1 // pred_fallthru
      _
    %v59 = vld [vmem:[#allocation2] sm:$0xff]
    %v60 = vld [vmem:[#allocation2 + $0x8] sm:$0xff]
    %v61 = vld [vmem:[#allocation2 + $0x10] sm:$0xff]
    %v62 = vld [vmem:[#allocation2 + $0x18] sm:$0xf]
    %v63 = vld [vmem:[#allocation2 + $0x1c] sm:$0xff]
    %v64 = vld [vmem:[#allocation2 + $0x24] sm:$0xff]
    %v65 = vld [vmem:[#allocation2 + $0x2c] sm:$0xff]
    %v66 = vld [vmem:[#allocation2 + $0x34] sm:$0xf]
    %v67 = vld [vmem:[#allocation2 + $0x38] sm:$0xff]
    %v68 = vld [vmem:[#allocation2 + $0x40] sm:$0xff]
    %v69 = vld [vmem:[#allocation2 + $0x48] sm:$0xff]
    %v70 = vld [vmem:[#allocation2 + $0x50] sm:$0xf]
    %v71 = vld [vmem:[#allocation2 + $0x54] sm:$0xff]
    %v72 = vld [vmem:[#allocation2 + $0x5c] sm:$0xff]
    %v73 = vld [vmem:[#allocation2 + $0x64] sm:$0xff]
    %v74 = vld [vmem:[#allocation2 + $0x6c] sm:$0xf]
    %v75 = vld [vmem:[#allocation2 + $0x70] sm:$0xff]
    %v76 = vld [vmem:[#allocation2 + $0x78] sm:$0xff]
    %v77 = vld [vmem:[#allocation2 + $0x80] sm:$0xff]
    %v78 = vld [vmem:[#allocation2 + $0x88] sm:$0xf]
    %v79 = vld [vmem:[#allocation2 + $0x8c] sm:$0xff]
    %v80 = vld [vmem:[#allocation2 + $0x94] sm:$0xff]
    %v81 = vld [vmem:[#allocation2 + $0x9c] sm:$0xff]
    %v82 = vld [vmem:[#allocation2 + $0xa4] sm:$0xf]
    %v83 = vld [vmem:[#allocation2 + $0xa8] sm:$0xff]
    %v84 = vld [vmem:[#allocation2 + $0xb0] sm:$0xff]
    %v85 = vld [vmem:[#allocation2 + $0xb8] sm:$0xff]
    %v86 = vld [vmem:[#allocation2 + $0xc0] sm:$0xf]
    %v87 = vld [vmem:[#allocation2 + $0xc4] sm:$0xff]
    %v88 = vld [vmem:[#allocation2 + $0xcc] sm:$0xff]
    %v89 = vld [vmem:[#allocation2 + $0xd4] sm:$0xff]
    %v90 = vld [vmem:[#allocation2 + $0xdc] sm:$0xf]
    %v91 = vld [vmem:[#allocation4] sm:$0xff]
    %v92 = vld [vmem:[#allocation4 + $0x8] sm:$0xff]
    %v93 = vld [vmem:[#allocation4 + $0x10] sm:$0xff]
    %v94 = vld [vmem:[#allocation4 + $0x18] sm:$0xff]
    %v95 = vld [vmem:[#allocation4 + $0x20] sm:$0xff]
    %v96 = vld [vmem:[#allocation4 + $0x28] sm:$0xff]
    %v97 = vld [vmem:[#allocation4 + $0x30] sm:$0xff]
    %v98 = vld [vmem:[#allocation4 + $0x38] sm:$0xff]
    %v99 = vld [vmem:[#allocation4 + $0x40] sm:$0xff]
    %v100 = vld [vmem:[#allocation4 + $0x48] sm:$0xff]
    %v101 = vld [vmem:[#allocation4 + $0x50] sm:$0xff]
    %v102 = vld [vmem:[#allocation4 + $0x58] sm:$0xff]
    %v103 = vld [vmem:[#allocation4 + $0x60] sm:$0xff]
    %v104 = vld [vmem:[#allocation4 + $0x68] sm:$0xff]
    %v105 = vld [vmem:[#allocation4 + $0x70] sm:$0xff]
    %v106 = vld [vmem:[#allocation4 + $0x78] sm:$0xff]
    %v107 = vld [vmem:[#allocation4 + $0x80] sm:$0xff]
    %v108 = vld [vmem:[#allocation4 + $0x88] sm:$0xff]
    %v109 = vld [vmem:[#allocation4 + $0x90] sm:$0xff]
    %v110 = vld [vmem:[#allocation4 + $0x98] sm:$0xff]
    %v111 = vld [vmem:[#allocation4 + $0xa0] sm:$0xff]
    %v112 = vld [vmem:[#allocation4 + $0xa8] sm:$0xff]
    %v113 = vld [vmem:[#allocation4 + $0xb0] sm:$0xff]
    %v114 = vld [vmem:[#allocation4 + $0xb8] sm:$0xff]
    %v115 = vld [vmem:[#allocation4 + $0xc0] sm:$0xff]
    %v116 = vld [vmem:[#allocation4 + $0xc8] sm:$0xff]
    %v117 = vld [vmem:[#allocation4 + $0xd0] sm:$0xff]
    %v118 = vld [vmem:[#allocation4 + $0xd8] sm:$0xff]
    %v119 = vld [vmem:[#allocation4 + $0xe0] sm:$0xff]
    %v120 = vld [vmem:[#allocation4 + $0xe8] sm:$0xff]
    %v121 = vld [vmem:[#allocation4 + $0xf0] sm:$0xff]
    %v122 = vld [vmem:[#allocation4 + $0xf8] sm:$0xff]
    %v123 = vld [vmem:[#allocation4 + $0x100] sm:$0xff]
    %v124 = vld [vmem:[#allocation4 + $0x108] sm:$0xff]
    %v125 = vld [vmem:[#allocation4 + $0x110] sm:$0xff]
    %v126 = vld [vmem:[#allocation4 + $0x118] sm:$0xff]
    %v127 = vld [vmem:[#allocation4 + $0x120] sm:$0xff]
    %v128 = vld [vmem:[#allocation4 + $0x128] sm:$0xff]
    %v129 = vld [vmem:[#allocation4 + $0x130] sm:$0xff]
    %v130 = vld [vmem:[#allocation4 + $0x138] sm:$0xff]
    %v131 = vld [vmem:[#allocation4 + $0x140] sm:$0xff]
    %v132 = vld [vmem:[#allocation4 + $0x148] sm:$0xff]
    %v133 = vld [vmem:[#allocation4 + $0x150] sm:$0xff]
    %v134 = vld [vmem:[#allocation4 + $0x158] sm:$0xff]
    %v135 = vld [vmem:[#allocation4 + $0x160] sm:$0xff]
    %v136 = vld [vmem:[#allocation4 + $0x168] sm:$0xff]
    %v137 = vld [vmem:[#allocation4 + $0x170] sm:$0xff]
    %v138 = vld [vmem:[#allocation4 + $0x178] sm:$0xff]
    %v139 = vld [vmem:[#allocation4 + $0x180] sm:$0xff]
    %v140 = vld [vmem:[#allocation4 + $0x188] sm:$0xff]
    %v141 = vld [vmem:[#allocation4 + $0x190] sm:$0xff]
    %v142 = vld [vmem:[#allocation4 + $0x198] sm:$0xff]
    %v143 = vld [vmem:[#allocation4 + $0x1a0] sm:$0xff]
    %v144 = vld [vmem:[#allocation4 + $0x1a8] sm:$0xff]
    %v145 = vld [vmem:[#allocation4 + $0x1b0] sm:$0xff]
    %v146 = vld [vmem:[#allocation4 + $0x1b8] sm:$0xff]
    %v147 = vld [vmem:[#allocation4 + $0x1c0] sm:$0xff]
    %v148 = vld [vmem:[#allocation4 + $0x1c8] sm:$0xff]
    %v149 = vld [vmem:[#allocation4 + $0x1d0] sm:$0xff]
    %v150 = vld [vmem:[#allocation4 + $0x1d8] sm:$0xff]
    %v151 = vld [vmem:[#allocation4 + $0x1e0] sm:$0xff]
    %v152 = vld [vmem:[#allocation4 + $0x1e8] sm:$0xff]
    %v153 = vld [vmem:[#allocation4 + $0x1f0] sm:$0xff]
    %v154 = vld [vmem:[#allocation4 + $0x1f8] sm:$0xff]
    %v155 = vld [vmem:[#allocation4 + $0x200] sm:$0xff]
    %v156 = vld [vmem:[#allocation4 + $0x208] sm:$0xff]
    %v157 = vld [vmem:[#allocation4 + $0x210] sm:$0xff]
    %v158 = vld [vmem:[#allocation4 + $0x218] sm:$0xff]
    %v159 = vld [vmem:[#allocation4 + $0x220] sm:$0xff]
    %v160 = vld [vmem:[#allocation4 + $0x228] sm:$0xff]
    %v161 = vld [vmem:[#allocation4 + $0x230] sm:$0xff]
    %v162 = vld [vmem:[#allocation4 + $0x238] sm:$0xff]
    %v163 = vld [vmem:[#allocation4 + $0x240] sm:$0xff]
    %v164 = vld [vmem:[#allocation4 + $0x248] sm:$0xff]
    %v165 = vld [vmem:[#allocation4 + $0x250] sm:$0xff]
    %v166 = vld [vmem:[#allocation4 + $0x258] sm:$0xff]
    %v167 = vld [vmem:[#allocation4 + $0x260] sm:$0xff]
    %v168 = vld [vmem:[#allocation4 + $0x268] sm:$0xff]
    %v169 = vld [vmem:[#allocation4 + $0x270] sm:$0xff]
    %v170 = vld [vmem:[#allocation4 + $0x278] sm:$0xff]
    %v171 = vld [vmem:[#allocation4 + $0x280] sm:$0xff]
    %v172 = vld [vmem:[#allocation4 + $0x288] sm:$0xff]
    %v173 = vld [vmem:[#allocation4 + $0x290] sm:$0xff]
    %v174 = vld [vmem:[#allocation4 + $0x298] sm:$0xff]
    %v175 = vld [vmem:[#allocation4 + $0x2a0] sm:$0xff]
    %v176 = vld [vmem:[#allocation4 + $0x2a8] sm:$0xff]
    %v177 = vld [vmem:[#allocation4 + $0x2b0] sm:$0xff]
    %v178 = vld [vmem:[#allocation4 + $0x2b8] sm:$0xff]
    %v179 = vld [vmem:[#allocation4 + $0x2c0] sm:$0xff]
    %v180 = vld [vmem:[#allocation4 + $0x2c8] sm:$0xff]
    %v181 = vld [vmem:[#allocation4 + $0x2d0] sm:$0xff]
    %v182 = vld [vmem:[#allocation4 + $0x2d8] sm:$0xff]
    %v183 = vld [vmem:[#allocation4 + $0x2e0] sm:$0xff]
    %v184 = vld [vmem:[#allocation4 + $0x2e8] sm:$0xff]
    %v185 = vld [vmem:[#allocation4 + $0x2f0] sm:$0xff]
    %v186 = vld [vmem:[#allocation4 + $0x2f8] sm:$0xff]
    %v187 = vld [vmem:[#allocation4 + $0x300] sm:$0xff]
    %v188 = vld [vmem:[#allocation4 + $0x308] sm:$0xff]
    %v189 = vld [vmem:[#allocation4 + $0x310] sm:$0xff]
    %v190 = vld [vmem:[#allocation4 + $0x318] sm:$0xff]
    %v191 = vld [vmem:[#allocation4 + $0x320] sm:$0xff]
    %v192 = vld [vmem:[#allocation4 + $0x328] sm:$0xff]
    %v193 = vld [vmem:[#allocation4 + $0x330] sm:$0xff]
    %v194 = vld [vmem:[#allocation4 + $0x338] sm:$0xff]
    %v195 = vld [vmem:[#allocation4 + $0x340] sm:$0xff]
    %v196 = vld [vmem:[#allocation4 + $0x348] sm:$0xff]
    %v197 = vld [vmem:[#allocation4 + $0x350] sm:$0xff]
    %v198 = vld [vmem:[#allocation4 + $0x358] sm:$0xff]
    %v199 = vld [vmem:[#allocation4 + $0x360] sm:$0xff]
    %v200 = vld [vmem:[#allocation4 + $0x368] sm:$0xff]
    %v201 = vld [vmem:[#allocation4 + $0x370] sm:$0xff]
    %v202 = vld [vmem:[#allocation4 + $0x378] sm:$0xff]
    %v203 = vld [vmem:[#allocation4 + $0x380] sm:$0xff]
    %v204 = vld [vmem:[#allocation4 + $0x388] sm:$0xff]
    %v205 = vld [vmem:[#allocation4 + $0x390] sm:$0xff]
    %v206 = vld [vmem:[#allocation4 + $0x398] sm:$0xff]
    %v207 = vld [vmem:[#allocation4 + $0x3a0] sm:$0xff]
    %v208 = vld [vmem:[#allocation4 + $0x3a8] sm:$0xff]
    %v209 = vld [vmem:[#allocation4 + $0x3b0] sm:$0xff]
    %v210 = vld [vmem:[#allocation4 + $0x3b8] sm:$0xff]
    %v211 = vld [vmem:[#allocation4 + $0x3c0] sm:$0xff]
    %v212 = vld [vmem:[#allocation4 + $0x3c8] sm:$0xff]
    %v213 = vld [vmem:[#allocation4 + $0x3d0] sm:$0xff]
    %v214 = vld [vmem:[#allocation4 + $0x3d8] sm:$0xff]
    %v215 = vld [vmem:[#allocation4 + $0x3e0] sm:$0xff]
    %v216 = vld [vmem:[#allocation4 + $0x3e8] sm:$0xff]
    %v217 = vld [vmem:[#allocation4 + $0x3f0] sm:$0xff]
    %v218 = vld [vmem:[#allocation4 + $0x3f8] sm:$0xff]
    %v219 = vld [vmem:[#allocation4 + $0x400] sm:$0xff]
    %v220 = vld [vmem:[#allocation4 + $0x408] sm:$0xff]
    %v221 = vld [vmem:[#allocation4 + $0x410] sm:$0xff]
    %v222 = vld [vmem:[#allocation4 + $0x418] sm:$0xff]
    %v223 = vld [vmem:[#allocation4 + $0x420] sm:$0xff]
    %v224 = vld [vmem:[#allocation4 + $0x428] sm:$0xff]
    %v225 = vld [vmem:[#allocation4 + $0x430] sm:$0xff]
    %v226 = vld [vmem:[#allocation4 + $0x438] sm:$0xff]
    %v227 = vld [vmem:[#allocation4 + $0x440] sm:$0xff]
    %v228 = vld [vmem:[#allocation4 + $0x448] sm:$0xff]
    %v229 = vld [vmem:[#allocation4 + $0x450] sm:$0xff]
    %v230 = vld [vmem:[#allocation4 + $0x458] sm:$0xff]
    %v231 = vld [vmem:[#allocation4 + $0x460] sm:$0xff]
    %v232 = vld [vmem:[#allocation4 + $0x468] sm:$0xff]
    %v233 = vld [vmem:[#allocation4 + $0x470] sm:$0xff]
    %v234 = vld [vmem:[#allocation4 + $0x478] sm:$0xff]
    %v235 = vld [vmem:[#allocation4 + $0x480] sm:$0xff]
    %v236 = vld [vmem:[#allocation4 + $0x488] sm:$0xff]
    %v237 = vld [vmem:[#allocation4 + $0x490] sm:$0xff]
    %v238 = vld [vmem:[#allocation4 + $0x498] sm:$0xff]
    %v239 = vld [vmem:[#allocation4 + $0x4a0] sm:$0xff]
    %v240 = vld [vmem:[#allocation4 + $0x4a8] sm:$0xff]
    %v241 = vld [vmem:[#allocation4 + $0x4b0] sm:$0xff]
    %v242 = vld [vmem:[#allocation4 + $0x4b8] sm:$0xff]
    %v243 = vld [vmem:[#allocation4 + $0x4c0] sm:$0xff]
    %v244 = vld [vmem:[#allocation4 + $0x4c8] sm:$0xff]
    %v245 = vld [vmem:[#allocation4 + $0x4d0] sm:$0xff]
    %v246 = vld [vmem:[#allocation4 + $0x4d8] sm:$0xff]
    %v247 = vld [vmem:[#allocation4 + $0x4e0] sm:$0xff]
    %v248 = vld [vmem:[#allocation4 + $0x4e8] sm:$0xff]
    %v249 = vld [vmem:[#allocation4 + $0x4f0] sm:$0xff]
    %v250 = vld [vmem:[#allocation4 + $0x4f8] sm:$0xff]
    %v251 = vld [vmem:[#allocation4 + $0x500] sm:$0xff]
    %v252 = vld [vmem:[#allocation4 + $0x508] sm:$0xff]
    %v253 = vld [vmem:[#allocation4 + $0x510] sm:$0xff]
    %v254 = vld [vmem:[#allocation4 + $0x518] sm:$0xff]
    %v255 = vld [vmem:[#allocation4 + $0x520] sm:$0xff]
    %v256 = vld [vmem:[#allocation4 + $0x528] sm:$0xff]
    %v257 = vld [vmem:[#allocation4 + $0x530] sm:$0xff]
    %v258 = vld [vmem:[#allocation4 + $0x538] sm:$0xff]
    %v259 = vld [vmem:[#allocation4 + $0x540] sm:$0xff]
    %v260 = vld [vmem:[#allocation4 + $0x548] sm:$0xff]
    %v261 = vld [vmem:[#allocation4 + $0x550] sm:$0xff]
    %v262 = vld [vmem:[#allocation4 + $0x558] sm:$0xff]
    %v263 = vld [vmem:[#allocation4 + $0x560] sm:$0xff]
    %v264 = vld [vmem:[#allocation4 + $0x568] sm:$0xff]
    %v265 = vld [vmem:[#allocation4 + $0x570] sm:$0xff]
    %v266 = vld [vmem:[#allocation4 + $0x578] sm:$0xff]
    %v267 = vld [vmem:[#allocation4 + $0x580] sm:$0xff]
    %v268 = vld [vmem:[#allocation4 + $0x588] sm:$0xff]
    %v269 = vld [vmem:[#allocation4 + $0x590] sm:$0xff]
    %v270 = vld [vmem:[#allocation4 + $0x598] sm:$0xff]
    %v271 = vld [vmem:[#allocation4 + $0x5a0] sm:$0xff]
    %v272 = vld [vmem:[#allocation4 + $0x5a8] sm:$0xff]
    %v273 = vld [vmem:[#allocation4 + $0x5b0] sm:$0xff]
    %v274 = vld [vmem:[#allocation4 + $0x5b8] sm:$0xff]
    %v275 = vld [vmem:[#allocation4 + $0x5c0] sm:$0xff]
    %v276 = vld [vmem:[#allocation4 + $0x5c8] sm:$0xff]
    %v277 = vld [vmem:[#allocation4 + $0x5d0] sm:$0xff]
    %v278 = vld [vmem:[#allocation4 + $0x5d8] sm:$0xff]
    %v279 = vld [vmem:[#allocation4 + $0x5e0] sm:$0xff]
    %v280 = vld [vmem:[#allocation4 + $0x5e8] sm:$0xff]
    %v281 = vld [vmem:[#allocation4 + $0x5f0] sm:$0xff]
    %v282 = vld [vmem:[#allocation4 + $0x5f8] sm:$0xff]
    %v283 = vld [vmem:[#allocation4 + $0x600] sm:$0xff]
    %v284 = vld [vmem:[#allocation4 + $0x608] sm:$0xff]
    %v285 = vld [vmem:[#allocation4 + $0x610] sm:$0xff]
    %v286 = vld [vmem:[#allocation4 + $0x618] sm:$0xff]
    %v319 = vunpack.c.l.b16 %v59
    %v320 = vunpack.c.h.b16 %v59
    %v321 = vunpack.c.l.b16 %v60
    %v322 = vunpack.c.h.b16 %v60
    %v323 = vunpack.c.l.b16 %v61
    %v324 = vunpack.c.h.b16 %v61
    %v325 = vunpack.c.l.b16 %v62
    %v326 = vunpack.c.l.b16 %v63
    %v327 = vunpack.c.h.b16 %v63
    %v328 = vunpack.c.l.b16 %v64
    %v329 = vunpack.c.h.b16 %v64
    %v330 = vunpack.c.l.b16 %v65
    %v331 = vunpack.c.h.b16 %v65
    %v332 = vunpack.c.l.b16 %v66
    %v333 = vunpack.c.l.b16 %v67
    %v334 = vunpack.c.h.b16 %v67
    %v335 = vunpack.c.l.b16 %v68
    %v336 = vunpack.c.h.b16 %v68
    %v337 = vunpack.c.l.b16 %v69
    %v338 = vunpack.c.h.b16 %v69
    %v339 = vunpack.c.l.b16 %v70
    %v340 = vunpack.c.l.b16 %v71
    %v341 = vunpack.c.h.b16 %v71
    %v342 = vunpack.c.l.b16 %v72
    %v343 = vunpack.c.h.b16 %v72
    %v344 = vunpack.c.l.b16 %v73
    %v345 = vunpack.c.h.b16 %v73
    %v346 = vunpack.c.l.b16 %v74
    %v347 = vunpack.c.l.b16 %v75
    %v348 = vunpack.c.h.b16 %v75
    %v349 = vunpack.c.l.b16 %v76
    %v350 = vunpack.c.h.b16 %v76
    %v351 = vunpack.c.l.b16 %v77
    %v352 = vunpack.c.h.b16 %v77
    %v353 = vunpack.c.l.b16 %v78
    %v354 = vunpack.c.l.b16 %v79
    %v355 = vunpack.c.h.b16 %v79
    %v356 = vunpack.c.l.b16 %v80
    %v357 = vunpack.c.h.b16 %v80
    %v358 = vunpack.c.l.b16 %v81
    %v359 = vunpack.c.h.b16 %v81
    %v360 = vunpack.c.l.b16 %v82
    %v361 = vunpack.c.l.b16 %v83
    %v362 = vunpack.c.h.b16 %v83
    %v363 = vunpack.c.l.b16 %v84
    %v364 = vunpack.c.h.b16 %v84
    %v365 = vunpack.c.l.b16 %v85
    %v366 = vunpack.c.h.b16 %v85
    %v367 = vunpack.c.l.b16 %v86
    %v368 = vunpack.c.l.b16 %v87
    %v369 = vunpack.c.h.b16 %v87
    %v370 = vunpack.c.l.b16 %v88
    %v371 = vunpack.c.h.b16 %v88
    %v372 = vunpack.c.l.b16 %v89
    %v373 = vunpack.c.h.b16 %v89
    %v374 = vunpack.c.l.b16 %v90
    %v375 = vpack.c.b16 %v326, %v319
    %v376 = vpack.c.b16 %v327, %v320
    %v377 = vpack.c.b16 %v328, %v321
    %v378 = vpack.c.b16 %v329, %v322
    %v379 = vpack.c.b16 %v330, %v323
    %v380 = vpack.c.b16 %v331, %v324
    %v381 = vpack.c.b16 %v332, %v325
    %v382 = vpack.c.b16 %v340, %v333
    %v383 = vpack.c.b16 %v341, %v334
    %v384 = vpack.c.b16 %v342, %v335
    %v385 = vpack.c.b16 %v343, %v336
    %v386 = vpack.c.b16 %v344, %v337
    %v387 = vpack.c.b16 %v345, %v338
    %v388 = vpack.c.b16 %v346, %v339
    %v389 = vpack.c.b16 %v354, %v347
    %v390 = vpack.c.b16 %v355, %v348
    %v391 = vpack.c.b16 %v356, %v349
    %v392 = vpack.c.b16 %v357, %v350
    %v393 = vpack.c.b16 %v358, %v351
    %v394 = vpack.c.b16 %v359, %v352
    %v395 = vpack.c.b16 %v360, %v353
    %v396 = vpack.c.b16 %v368, %v361
    %v397 = vpack.c.b16 %v369, %v362
    %v398 = vpack.c.b16 %v370, %v363
    %v399 = vpack.c.b16 %v371, %v364
    %v400 = vpack.c.b16 %v372, %v365
    %v401 = vpack.c.b16 %v373, %v366
    %v402 = vpack.c.b16 %v374, %v367
    %v623 = vunpack.c.l.b16 %v91
    %v624 = vunpack.c.h.b16 %v91
    %v625 = vunpack.c.l.b16 %v92
    %v626 = vunpack.c.h.b16 %v92
    %v627 = vunpack.c.l.b16 %v93
    %v628 = vunpack.c.h.b16 %v93
    %v629 = vunpack.c.l.b16 %v94
    %v630 = vunpack.c.h.b16 %v94
    %v631 = vunpack.c.l.b16 %v95
    %v632 = vunpack.c.h.b16 %v95
    %v633 = vunpack.c.l.b16 %v96
    %v634 = vunpack.c.h.b16 %v96
    %v635 = vunpack.c.l.b16 %v97
    %v636 = vunpack.c.h.b16 %v97
    %v637 = vunpack.c.l.b16 %v98
    %v638 = vunpack.c.h.b16 %v98
    %v639 = vunpack.c.l.b16 %v99
    %v640 = vunpack.c.h.b16 %v99
    %v641 = vunpack.c.l.b16 %v100
    %v642 = vunpack.c.h.b16 %v100
    %v643 = vunpack.c.l.b16 %v101
    %v644 = vunpack.c.h.b16 %v101
    %v645 = vunpack.c.l.b16 %v102
    %v646 = vunpack.c.h.b16 %v102
    %v647 = vunpack.c.l.b16 %v103
    %v648 = vunpack.c.h.b16 %v103
    %v649 = vunpack.c.l.b16 %v104
    %v650 = vunpack.c.h.b16 %v104
    %v651 = vunpack.c.l.b16 %v105
    %v652 = vunpack.c.h.b16 %v105
    %v653 = vunpack.c.l.b16 %v106
    %v654 = vunpack.c.h.b16 %v106
    %v655 = vunpack.c.l.b16 %v107
    %v656 = vunpack.c.h.b16 %v107
    %v657 = vunpack.c.l.b16 %v108
    %v658 = vunpack.c.h.b16 %v108
    %v659 = vunpack.c.l.b16 %v109
    %v660 = vunpack.c.h.b16 %v109
    %v661 = vunpack.c.l.b16 %v110
    %v662 = vunpack.c.h.b16 %v110
    %v663 = vunpack.c.l.b16 %v111
    %v664 = vunpack.c.h.b16 %v111
    %v665 = vunpack.c.l.b16 %v112
    %v666 = vunpack.c.h.b16 %v112
    %v667 = vunpack.c.l.b16 %v113
    %v668 = vunpack.c.h.b16 %v113
    %v669 = vunpack.c.l.b16 %v114
    %v670 = vunpack.c.h.b16 %v114
    %v671 = vunpack.c.l.b16 %v115
    %v672 = vunpack.c.h.b16 %v115
    %v673 = vunpack.c.l.b16 %v116
    %v674 = vunpack.c.h.b16 %v116
    %v675 = vunpack.c.l.b16 %v117
    %v676 = vunpack.c.h.b16 %v117
    %v677 = vunpack.c.l.b16 %v118
    %v678 = vunpack.c.h.b16 %v118
    %v679 = vunpack.c.l.b16 %v119
    %v680 = vunpack.c.h.b16 %v119
    %v681 = vunpack.c.l.b16 %v120
    %v682 = vunpack.c.h.b16 %v120
    %v683 = vunpack.c.l.b16 %v121
    %v684 = vunpack.c.h.b16 %v121
    %v685 = vunpack.c.l.b16 %v122
    %v686 = vunpack.c.h.b16 %v122
    %v687 = vunpack.c.l.b16 %v123
    %v688 = vunpack.c.h.b16 %v123
    %v689 = vunpack.c.l.b16 %v124
    %v690 = vunpack.c.h.b16 %v124
    %v691 = vunpack.c.l.b16 %v125
    %v692 = vunpack.c.h.b16 %v125
    %v693 = vunpack.c.l.b16 %v126
    %v694 = vunpack.c.h.b16 %v126
    %v695 = vunpack.c.l.b16 %v127
    %v696 = vunpack.c.h.b16 %v127
    %v697 = vunpack.c.l.b16 %v128
    %v698 = vunpack.c.h.b16 %v128
    %v699 = vunpack.c.l.b16 %v129
    %v700 = vunpack.c.h.b16 %v129
    %v701 = vunpack.c.l.b16 %v130
    %v702 = vunpack.c.h.b16 %v130
    %v703 = vunpack.c.l.b16 %v131
    %v704 = vunpack.c.h.b16 %v131
    %v705 = vunpack.c.l.b16 %v132
    %v706 = vunpack.c.h.b16 %v132
    %v707 = vunpack.c.l.b16 %v133
    %v708 = vunpack.c.h.b16 %v133
    %v709 = vunpack.c.l.b16 %v134
    %v710 = vunpack.c.h.b16 %v134
    %v711 = vunpack.c.l.b16 %v135
    %v712 = vunpack.c.h.b16 %v135
    %v713 = vunpack.c.l.b16 %v136
    %v714 = vunpack.c.h.b16 %v136
    %v715 = vunpack.c.l.b16 %v137
    %v716 = vunpack.c.h.b16 %v137
    %v717 = vunpack.c.l.b16 %v138
    %v718 = vunpack.c.h.b16 %v138
    %v719 = vunpack.c.l.b16 %v139
    %v720 = vunpack.c.h.b16 %v139
    %v721 = vunpack.c.l.b16 %v140
    %v722 = vunpack.c.h.b16 %v140
    %v723 = vunpack.c.l.b16 %v141
    %v724 = vunpack.c.h.b16 %v141
    %v725 = vunpack.c.l.b16 %v142
    %v726 = vunpack.c.h.b16 %v142
    %v727 = vunpack.c.l.b16 %v143
    %v728 = vunpack.c.h.b16 %v143
    %v729 = vunpack.c.l.b16 %v144
    %v730 = vunpack.c.h.b16 %v144
    %v731 = vunpack.c.l.b16 %v145
    %v732 = vunpack.c.h.b16 %v145
    %v733 = vunpack.c.l.b16 %v146
    %v734 = vunpack.c.h.b16 %v146
    %v735 = vunpack.c.l.b16 %v147
    %v736 = vunpack.c.h.b16 %v147
    %v737 = vunpack.c.l.b16 %v148
    %v738 = vunpack.c.h.b16 %v148
    %v739 = vunpack.c.l.b16 %v149
    %v740 = vunpack.c.h.b16 %v149
    %v741 = vunpack.c.l.b16 %v150
    %v742 = vunpack.c.h.b16 %v150
    %v743 = vunpack.c.l.b16 %v151
    %v744 = vunpack.c.h.b16 %v151
    %v745 = vunpack.c.l.b16 %v152
    %v746 = vunpack.c.h.b16 %v152
    %v747 = vunpack.c.l.b16 %v153
    %v748 = vunpack.c.h.b16 %v153
    %v749 = vunpack.c.l.b16 %v154
    %v750 = vunpack.c.h.b16 %v154
    %v751 = vunpack.c.l.b16 %v155
    %v752 = vunpack.c.h.b16 %v155
    %v753 = vunpack.c.l.b16 %v156
    %v754 = vunpack.c.h.b16 %v156
    %v755 = vunpack.c.l.b16 %v157
    %v756 = vunpack.c.h.b16 %v157
    %v757 = vunpack.c.l.b16 %v158
    %v758 = vunpack.c.h.b16 %v158
    %v759 = vunpack.c.l.b16 %v159
    %v760 = vunpack.c.h.b16 %v159
    %v761 = vunpack.c.l.b16 %v160
    %v762 = vunpack.c.h.b16 %v160
    %v763 = vunpack.c.l.b16 %v161
    %v764 = vunpack.c.h.b16 %v161
    %v765 = vunpack.c.l.b16 %v162
    %v766 = vunpack.c.h.b16 %v162
    %v767 = vunpack.c.l.b16 %v163
    %v768 = vunpack.c.h.b16 %v163
    %v769 = vunpack.c.l.b16 %v164
    %v770 = vunpack.c.h.b16 %v164
    %v771 = vunpack.c.l.b16 %v165
    %v772 = vunpack.c.h.b16 %v165
    %v773 = vunpack.c.l.b16 %v166
    %v774 = vunpack.c.h.b16 %v166
    %v775 = vunpack.c.l.b16 %v167
    %v776 = vunpack.c.h.b16 %v167
    %v777 = vunpack.c.l.b16 %v168
    %v778 = vunpack.c.h.b16 %v168
    %v779 = vunpack.c.l.b16 %v169
    %v780 = vunpack.c.h.b16 %v169
    %v781 = vunpack.c.l.b16 %v170
    %v782 = vunpack.c.h.b16 %v170
    %v783 = vunpack.c.l.b16 %v171
    %v784 = vunpack.c.h.b16 %v171
    %v785 = vunpack.c.l.b16 %v172
    %v786 = vunpack.c.h.b16 %v172
    %v787 = vunpack.c.l.b16 %v173
    %v788 = vunpack.c.h.b16 %v173
    %v789 = vunpack.c.l.b16 %v174
    %v790 = vunpack.c.h.b16 %v174
    %v791 = vunpack.c.l.b16 %v175
    %v792 = vunpack.c.h.b16 %v175
    %v793 = vunpack.c.l.b16 %v176
    %v794 = vunpack.c.h.b16 %v176
    %v795 = vunpack.c.l.b16 %v177
    %v796 = vunpack.c.h.b16 %v177
    %v797 = vunpack.c.l.b16 %v178
    %v798 = vunpack.c.h.b16 %v178
    %v799 = vunpack.c.l.b16 %v179
    %v800 = vunpack.c.h.b16 %v179
    %v801 = vunpack.c.l.b16 %v180
    %v802 = vunpack.c.h.b16 %v180
    %v803 = vunpack.c.l.b16 %v181
    %v804 = vunpack.c.h.b16 %v181
    %v805 = vunpack.c.l.b16 %v182
    %v806 = vunpack.c.h.b16 %v182
    %v807 = vunpack.c.l.b16 %v183
    %v808 = vunpack.c.h.b16 %v183
    %v809 = vunpack.c.l.b16 %v184
    %v810 = vunpack.c.h.b16 %v184
    %v811 = vunpack.c.l.b16 %v185
    %v812 = vunpack.c.h.b16 %v185
    %v813 = vunpack.c.l.b16 %v186
    %v814 = vunpack.c.h.b16 %v186
    %v815 = vunpack.c.l.b16 %v187
    %v816 = vunpack.c.h.b16 %v187
    %v817 = vunpack.c.l.b16 %v188
    %v818 = vunpack.c.h.b16 %v188
    %v819 = vunpack.c.l.b16 %v189
    %v820 = vunpack.c.h.b16 %v189
    %v821 = vunpack.c.l.b16 %v190
    %v822 = vunpack.c.h.b16 %v190
    %v823 = vunpack.c.l.b16 %v191
    %v824 = vunpack.c.h.b16 %v191
    %v825 = vunpack.c.l.b16 %v192
    %v826 = vunpack.c.h.b16 %v192
    %v827 = vunpack.c.l.b16 %v193
    %v828 = vunpack.c.h.b16 %v193
    %v829 = vunpack.c.l.b16 %v194
    %v830 = vunpack.c.h.b16 %v194
    %v831 = vunpack.c.l.b16 %v195
    %v832 = vunpack.c.h.b16 %v195
    %v833 = vunpack.c.l.b16 %v196
    %v834 = vunpack.c.h.b16 %v196
    %v835 = vunpack.c.l.b16 %v197
    %v836 = vunpack.c.h.b16 %v197
    %v837 = vunpack.c.l.b16 %v198
    %v838 = vunpack.c.h.b16 %v198
    %v839 = vunpack.c.l.b16 %v199
    %v840 = vunpack.c.h.b16 %v199
    %v841 = vunpack.c.l.b16 %v200
    %v842 = vunpack.c.h.b16 %v200
    %v843 = vunpack.c.l.b16 %v201
    %v844 = vunpack.c.h.b16 %v201
    %v845 = vunpack.c.l.b16 %v202
    %v846 = vunpack.c.h.b16 %v202
    %v847 = vunpack.c.l.b16 %v203
    %v848 = vunpack.c.h.b16 %v203
    %v849 = vunpack.c.l.b16 %v204
    %v850 = vunpack.c.h.b16 %v204
    %v851 = vunpack.c.l.b16 %v205
    %v852 = vunpack.c.h.b16 %v205
    %v853 = vunpack.c.l.b16 %v206
    %v854 = vunpack.c.h.b16 %v206
    %v855 = vunpack.c.l.b16 %v207
    %v856 = vunpack.c.h.b16 %v207
    %v857 = vunpack.c.l.b16 %v208
    %v858 = vunpack.c.h.b16 %v208
    %v859 = vunpack.c.l.b16 %v209
    %v860 = vunpack.c.h.b16 %v209
    %v861 = vunpack.c.l.b16 %v210
    %v862 = vunpack.c.h.b16 %v210
    %v863 = vunpack.c.l.b16 %v211
    %v864 = vunpack.c.h.b16 %v211
    %v865 = vunpack.c.l.b16 %v212
    %v866 = vunpack.c.h.b16 %v212
    %v867 = vunpack.c.l.b16 %v213
    %v868 = vunpack.c.h.b16 %v213
    %v869 = vunpack.c.l.b16 %v214
    %v870 = vunpack.c.h.b16 %v214
    %v871 = vunpack.c.l.b16 %v215
    %v872 = vunpack.c.h.b16 %v215
    %v873 = vunpack.c.l.b16 %v216
    %v874 = vunpack.c.h.b16 %v216
    %v875 = vunpack.c.l.b16 %v217
    %v876 = vunpack.c.h.b16 %v217
    %v877 = vunpack.c.l.b16 %v218
    %v878 = vunpack.c.h.b16 %v218
    %v879 = vunpack.c.l.b16 %v219
    %v880 = vunpack.c.h.b16 %v219
    %v881 = vunpack.c.l.b16 %v220
    %v882 = vunpack.c.h.b16 %v220
    %v883 = vunpack.c.l.b16 %v221
    %v884 = vunpack.c.h.b16 %v221
    %v885 = vunpack.c.l.b16 %v222
    %v886 = vunpack.c.h.b16 %v222
    %v887 = vunpack.c.l.b16 %v223
    %v888 = vunpack.c.h.b16 %v223
    %v889 = vunpack.c.l.b16 %v224
    %v890 = vunpack.c.h.b16 %v224
    %v891 = vunpack.c.l.b16 %v225
    %v892 = vunpack.c.h.b16 %v225
    %v893 = vunpack.c.l.b16 %v226
    %v894 = vunpack.c.h.b16 %v226
    %v895 = vunpack.c.l.b16 %v227
    %v896 = vunpack.c.h.b16 %v227
    %v897 = vunpack.c.l.b16 %v228
    %v898 = vunpack.c.h.b16 %v228
    %v899 = vunpack.c.l.b16 %v229
    %v900 = vunpack.c.h.b16 %v229
    %v901 = vunpack.c.l.b16 %v230
    %v902 = vunpack.c.h.b16 %v230
    %v903 = vunpack.c.l.b16 %v231
    %v904 = vunpack.c.h.b16 %v231
    %v905 = vunpack.c.l.b16 %v232
    %v906 = vunpack.c.h.b16 %v232
    %v907 = vunpack.c.l.b16 %v233
    %v908 = vunpack.c.h.b16 %v233
    %v909 = vunpack.c.l.b16 %v234
    %v910 = vunpack.c.h.b16 %v234
    %v911 = vunpack.c.l.b16 %v235
    %v912 = vunpack.c.h.b16 %v235
    %v913 = vunpack.c.l.b16 %v236
    %v914 = vunpack.c.h.b16 %v236
    %v915 = vunpack.c.l.b16 %v237
    %v916 = vunpack.c.h.b16 %v237
    %v917 = vunpack.c.l.b16 %v238
    %v918 = vunpack.c.h.b16 %v238
    %v919 = vunpack.c.l.b16 %v239
    %v920 = vunpack.c.h.b16 %v239
    %v921 = vunpack.c.l.b16 %v240
    %v922 = vunpack.c.h.b16 %v240
    %v923 = vunpack.c.l.b16 %v241
    %v924 = vunpack.c.h.b16 %v241
    %v925 = vunpack.c.l.b16 %v242
    %v926 = vunpack.c.h.b16 %v242
    %v927 = vunpack.c.l.b16 %v243
    %v928 = vunpack.c.h.b16 %v243
    %v929 = vunpack.c.l.b16 %v244
    %v930 = vunpack.c.h.b16 %v244
    %v931 = vunpack.c.l.b16 %v245
    %v932 = vunpack.c.h.b16 %v245
    %v933 = vunpack.c.l.b16 %v246
    %v934 = vunpack.c.h.b16 %v246
    %v935 = vunpack.c.l.b16 %v247
    %v936 = vunpack.c.h.b16 %v247
    %v937 = vunpack.c.l.b16 %v248
    %v938 = vunpack.c.h.b16 %v248
    %v939 = vunpack.c.l.b16 %v249
    %v940 = vunpack.c.h.b16 %v249
    %v941 = vunpack.c.l.b16 %v250
    %v942 = vunpack.c.h.b16 %v250
    %v943 = vunpack.c.l.b16 %v251
    %v944 = vunpack.c.h.b16 %v251
    %v945 = vunpack.c.l.b16 %v252
    %v946 = vunpack.c.h.b16 %v252
    %v947 = vunpack.c.l.b16 %v253
    %v948 = vunpack.c.h.b16 %v253
    %v949 = vunpack.c.l.b16 %v254
    %v950 = vunpack.c.h.b16 %v254
    %v951 = vunpack.c.l.b16 %v255
    %v952 = vunpack.c.h.b16 %v255
    %v953 = vunpack.c.l.b16 %v256
    %v954 = vunpack.c.h.b16 %v256
    %v955 = vunpack.c.l.b16 %v257
    %v956 = vunpack.c.h.b16 %v257
    %v957 = vunpack.c.l.b16 %v258
    %v958 = vunpack.c.h.b16 %v258
    %v959 = vunpack.c.l.b16 %v259
    %v960 = vunpack.c.h.b16 %v259
    %v961 = vunpack.c.l.b16 %v260
    %v962 = vunpack.c.h.b16 %v260
    %v963 = vunpack.c.l.b16 %v261
    %v964 = vunpack.c.h.b16 %v261
    %v965 = vunpack.c.l.b16 %v262
    %v966 = vunpack.c.h.b16 %v262
    %v967 = vunpack.c.l.b16 %v263
    %v968 = vunpack.c.h.b16 %v263
    %v969 = vunpack.c.l.b16 %v264
    %v970 = vunpack.c.h.b16 %v264
    %v971 = vunpack.c.l.b16 %v265
    %v972 = vunpack.c.h.b16 %v265
    %v973 = vunpack.c.l.b16 %v266
    %v974 = vunpack.c.h.b16 %v266
    %v975 = vunpack.c.l.b16 %v267
    %v976 = vunpack.c.h.b16 %v267
    %v977 = vunpack.c.l.b16 %v268
    %v978 = vunpack.c.h.b16 %v268
    %v979 = vunpack.c.l.b16 %v269
    %v980 = vunpack.c.h.b16 %v269
    %v981 = vunpack.c.l.b16 %v270
    %v982 = vunpack.c.h.b16 %v270
    %v983 = vunpack.c.l.b16 %v271
    %v984 = vunpack.c.h.b16 %v271
    %v985 = vunpack.c.l.b16 %v272
    %v986 = vunpack.c.h.b16 %v272
    %v987 = vunpack.c.l.b16 %v273
    %v988 = vunpack.c.h.b16 %v273
    %v989 = vunpack.c.l.b16 %v274
    %v990 = vunpack.c.h.b16 %v274
    %v991 = vunpack.c.l.b16 %v275
    %v992 = vunpack.c.h.b16 %v275
    %v993 = vunpack.c.l.b16 %v276
    %v994 = vunpack.c.h.b16 %v276
    %v995 = vunpack.c.l.b16 %v277
    %v996 = vunpack.c.h.b16 %v277
    %v997 = vunpack.c.l.b16 %v278
    %v998 = vunpack.c.h.b16 %v278
    %v999 = vunpack.c.l.b16 %v279
    %v1000 = vunpack.c.h.b16 %v279
    %v1001 = vunpack.c.l.b16 %v280
    %v1002 = vunpack.c.h.b16 %v280
    %v1003 = vunpack.c.l.b16 %v281
    %v1004 = vunpack.c.h.b16 %v281
    %v1005 = vunpack.c.l.b16 %v282
    %v1006 = vunpack.c.h.b16 %v282
    %v1007 = vunpack.c.l.b16 %v283
    %v1008 = vunpack.c.h.b16 %v283
    %v1009 = vunpack.c.l.b16 %v284
    %v1010 = vunpack.c.h.b16 %v284
    %v1011 = vunpack.c.l.b16 %v285
    %v1012 = vunpack.c.h.b16 %v285
    %v1013 = vunpack.c.l.b16 %v286
    %v1014 = vunpack.c.h.b16 %v286
    %v1015 = vpack.c.b16 %v627, %v623
    %v1016 = vpack.c.b16 %v628, %v624
    %v1017 = vpack.c.b16 %v629, %v625
    %v1018 = vpack.c.b16 %v630, %v626
    %v1019 = vpack.c.b16 %v635, %v631
    %v1020 = vpack.c.b16 %v636, %v632
    %v1021 = vpack.c.b16 %v637, %v633
    %v1022 = vpack.c.b16 %v638, %v634
    %v1023 = vpack.c.b16 %v643, %v639
    %v1024 = vpack.c.b16 %v644, %v640
    %v1025 = vpack.c.b16 %v645, %v641
    %v1026 = vpack.c.b16 %v646, %v642
    %v1027 = vpack.c.b16 %v651, %v647
    %v1028 = vpack.c.b16 %v652, %v648
    %v1029 = vpack.c.b16 %v653, %v649
    %v1030 = vpack.c.b16 %v654, %v650
    %v1031 = vpack.c.b16 %v659, %v655
    %v1032 = vpack.c.b16 %v660, %v656
    %v1033 = vpack.c.b16 %v661, %v657
    %v1034 = vpack.c.b16 %v662, %v658
    %v1035 = vpack.c.b16 %v667, %v663
    %v1036 = vpack.c.b16 %v668, %v664
    %v1037 = vpack.c.b16 %v669, %v665
    %v1038 = vpack.c.b16 %v670, %v666
    %v1039 = vpack.c.b16 %v675, %v671
    %v1040 = vpack.c.b16 %v676, %v672
    %v1041 = vpack.c.b16 %v677, %v673
    %v1042 = vpack.c.b16 %v678, %v674
    %v1043 = vpack.c.b16 %v683, %v679
    %v1044 = vpack.c.b16 %v684, %v680
    %v1045 = vpack.c.b16 %v685, %v681
    %v1046 = vpack.c.b16 %v686, %v682
    %v1047 = vpack.c.b16 %v691, %v687
    %v1048 = vpack.c.b16 %v692, %v688
    %v1049 = vpack.c.b16 %v693, %v689
    %v1050 = vpack.c.b16 %v694, %v690
    %v1051 = vpack.c.b16 %v699, %v695
    %v1052 = vpack.c.b16 %v700, %v696
    %v1053 = vpack.c.b16 %v701, %v697
    %v1054 = vpack.c.b16 %v702, %v698
    %v1055 = vpack.c.b16 %v707, %v703
    %v1056 = vpack.c.b16 %v708, %v704
    %v1057 = vpack.c.b16 %v709, %v705
    %v1058 = vpack.c.b16 %v710, %v706
    %v1059 = vpack.c.b16 %v715, %v711
    %v1060 = vpack.c.b16 %v716, %v712
    %v1061 = vpack.c.b16 %v717, %v713
    %v1062 = vpack.c.b16 %v718, %v714
    %v1063 = vpack.c.b16 %v723, %v719
    %v1064 = vpack.c.b16 %v724, %v720
    %v1065 = vpack.c.b16 %v725, %v721
    %v1066 = vpack.c.b16 %v726, %v722
    %v1067 = vpack.c.b16 %v731, %v727
    %v1068 = vpack.c.b16 %v732, %v728
    %v1069 = vpack.c.b16 %v733, %v729
    %v1070 = vpack.c.b16 %v734, %v730
    %v1071 = vpack.c.b16 %v739, %v735
    %v1072 = vpack.c.b16 %v740, %v736
    %v1073 = vpack.c.b16 %v741, %v737
    %v1074 = vpack.c.b16 %v742, %v738
    %v1075 = vpack.c.b16 %v747, %v743
    %v1076 = vpack.c.b16 %v748, %v744
    %v1077 = vpack.c.b16 %v749, %v745
    %v1078 = vpack.c.b16 %v750, %v746
    %v1079 = vpack.c.b16 %v755, %v751
    %v1080 = vpack.c.b16 %v756, %v752
    %v1081 = vpack.c.b16 %v757, %v753
    %v1082 = vpack.c.b16 %v758, %v754
    %v1083 = vpack.c.b16 %v763, %v759
    %v1084 = vpack.c.b16 %v764, %v760
    %v1085 = vpack.c.b16 %v765, %v761
    %v1086 = vpack.c.b16 %v766, %v762
    %v1087 = vpack.c.b16 %v771, %v767
    %v1088 = vpack.c.b16 %v772, %v768
    %v1089 = vpack.c.b16 %v773, %v769
    %v1090 = vpack.c.b16 %v774, %v770
    %v1091 = vpack.c.b16 %v779, %v775
    %v1092 = vpack.c.b16 %v780, %v776
    %v1093 = vpack.c.b16 %v781, %v777
    %v1094 = vpack.c.b16 %v782, %v778
    %v1095 = vpack.c.b16 %v787, %v783
    %v1096 = vpack.c.b16 %v788, %v784
    %v1097 = vpack.c.b16 %v789, %v785
    %v1098 = vpack.c.b16 %v790, %v786
    %v1099 = vpack.c.b16 %v795, %v791
    %v1100 = vpack.c.b16 %v796, %v792
    %v1101 = vpack.c.b16 %v797, %v793
    %v1102 = vpack.c.b16 %v798, %v794
    %v1103 = vpack.c.b16 %v803, %v799
    %v1104 = vpack.c.b16 %v804, %v800
    %v1105 = vpack.c.b16 %v805, %v801
    %v1106 = vpack.c.b16 %v806, %v802
    %v1107 = vpack.c.b16 %v811, %v807
    %v1108 = vpack.c.b16 %v812, %v808
    %v1109 = vpack.c.b16 %v813, %v809
    %v1110 = vpack.c.b16 %v814, %v810
    %v1111 = vpack.c.b16 %v819, %v815
    %v1112 = vpack.c.b16 %v820, %v816
    %v1113 = vpack.c.b16 %v821, %v817
    %v1114 = vpack.c.b16 %v822, %v818
    %v1115 = vpack.c.b16 %v827, %v823
    %v1116 = vpack.c.b16 %v828, %v824
    %v1117 = vpack.c.b16 %v829, %v825
    %v1118 = vpack.c.b16 %v830, %v826
    %v1119 = vpack.c.b16 %v835, %v831
    %v1120 = vpack.c.b16 %v836, %v832
    %v1121 = vpack.c.b16 %v837, %v833
    %v1122 = vpack.c.b16 %v838, %v834
    %v1123 = vpack.c.b16 %v843, %v839
    %v1124 = vpack.c.b16 %v844, %v840
    %v1125 = vpack.c.b16 %v845, %v841
    %v1126 = vpack.c.b16 %v846, %v842
    %v1127 = vpack.c.b16 %v851, %v847
    %v1128 = vpack.c.b16 %v852, %v848
    %v1129 = vpack.c.b16 %v853, %v849
    %v1130 = vpack.c.b16 %v854, %v850
    %v1131 = vpack.c.b16 %v859, %v855
    %v1132 = vpack.c.b16 %v860, %v856
    %v1133 = vpack.c.b16 %v861, %v857
    %v1134 = vpack.c.b16 %v862, %v858
    %v1135 = vpack.c.b16 %v867, %v863
    %v1136 = vpack.c.b16 %v868, %v864
    %v1137 = vpack.c.b16 %v869, %v865
    %v1138 = vpack.c.b16 %v870, %v866
    %v1139 = vpack.c.b16 %v875, %v871
    %v1140 = vpack.c.b16 %v876, %v872
    %v1141 = vpack.c.b16 %v877, %v873
    %v1142 = vpack.c.b16 %v878, %v874
    %v1143 = vpack.c.b16 %v883, %v879
    %v1144 = vpack.c.b16 %v884, %v880
    %v1145 = vpack.c.b16 %v885, %v881
    %v1146 = vpack.c.b16 %v886, %v882
    %v1147 = vpack.c.b16 %v891, %v887
    %v1148 = vpack.c.b16 %v892, %v888
    %v1149 = vpack.c.b16 %v893, %v889
    %v1150 = vpack.c.b16 %v894, %v890
    %v1151 = vpack.c.b16 %v899, %v895
    %v1152 = vpack.c.b16 %v900, %v896
    %v1153 = vpack.c.b16 %v901, %v897
    %v1154 = vpack.c.b16 %v902, %v898
    %v1155 = vpack.c.b16 %v907, %v903
    %v1156 = vpack.c.b16 %v908, %v904
    %v1157 = vpack.c.b16 %v909, %v905
    %v1158 = vpack.c.b16 %v910, %v906
    %v1159 = vpack.c.b16 %v915, %v911
    %v1160 = vpack.c.b16 %v916, %v912
    %v1161 = vpack.c.b16 %v917, %v913
    %v1162 = vpack.c.b16 %v918, %v914
    %v1163 = vpack.c.b16 %v923, %v919
    %v1164 = vpack.c.b16 %v924, %v920
    %v1165 = vpack.c.b16 %v925, %v921
    %v1166 = vpack.c.b16 %v926, %v922
    %v1167 = vpack.c.b16 %v931, %v927
    %v1168 = vpack.c.b16 %v932, %v928
    %v1169 = vpack.c.b16 %v933, %v929
    %v1170 = vpack.c.b16 %v934, %v930
    %v1171 = vpack.c.b16 %v939, %v935
    %v1172 = vpack.c.b16 %v940, %v936
    %v1173 = vpack.c.b16 %v941, %v937
    %v1174 = vpack.c.b16 %v942, %v938
    %v1175 = vpack.c.b16 %v947, %v943
    %v1176 = vpack.c.b16 %v948, %v944
    %v1177 = vpack.c.b16 %v949, %v945
    %v1178 = vpack.c.b16 %v950, %v946
    %v1179 = vpack.c.b16 %v955, %v951
    %v1180 = vpack.c.b16 %v956, %v952
    %v1181 = vpack.c.b16 %v957, %v953
    %v1182 = vpack.c.b16 %v958, %v954
    %v1183 = vpack.c.b16 %v963, %v959
    %v1184 = vpack.c.b16 %v964, %v960
    %v1185 = vpack.c.b16 %v965, %v961
    %v1186 = vpack.c.b16 %v966, %v962
    %v1187 = vpack.c.b16 %v971, %v967
    %v1188 = vpack.c.b16 %v972, %v968
    %v1189 = vpack.c.b16 %v973, %v969
    %v1190 = vpack.c.b16 %v974, %v970
    %v1191 = vpack.c.b16 %v979, %v975
    %v1192 = vpack.c.b16 %v980, %v976
    %v1193 = vpack.c.b16 %v981, %v977
    %v1194 = vpack.c.b16 %v982, %v978
    %v1195 = vpack.c.b16 %v987, %v983
    %v1196 = vpack.c.b16 %v988, %v984
    %v1197 = vpack.c.b16 %v989, %v985
    %v1198 = vpack.c.b16 %v990, %v986
    %v1199 = vpack.c.b16 %v995, %v991
    %v1200 = vpack.c.b16 %v996, %v992
    %v1201 = vpack.c.b16 %v997, %v993
    %v1202 = vpack.c.b16 %v998, %v994
    %v1203 = vpack.c.b16 %v1003, %v999
    %v1204 = vpack.c.b16 %v1004, %v1000
    %v1205 = vpack.c.b16 %v1005, %v1001
    %v1206 = vpack.c.b16 %v1006, %v1002
    %v1207 = vpack.c.b16 %v1011, %v1007
    %v1208 = vpack.c.b16 %v1012, %v1008
    %v1209 = vpack.c.b16 %v1013, %v1009
    %v1210 = vpack.c.b16 %v1014, %v1010
    %vm1407 = vcmask 130048
    %v1409 = vsel %vm1407, %v381, 0
    %v1412 = vsel %vm1407, %v388, 0
    %v1415 = vsel %vm1407, %v395, 0
    %v1418 = vsel %vm1407, %v402, 0
    %1420 = vmatprep.subr.bf16.mxu0 %v1016
    %1421 = vmatpush1.bf16.msra.mxu0 %v1015
    %1422 = vmatprep.subr.bf16.mxu0 %v1020
    %1423 = vmatpush1.bf16.msra.mxu0 %v1019
    %1424 = vmatprep.subr.bf16.mxu0 %v1024
    %1425 = vmatpush1.bf16.msra.mxu0 %v1023
    %1426 = vmatprep.subr.bf16.mxu0 %v1028
    %1427 = vmatpush1.bf16.msra.mxu0 %v1027
    %1428 = vmatprep.subr.bf16.mxu0 %v1032
    %1429 = vmatpush1.bf16.msra.mxu0 %v1031
    %1430 = vmatprep.subr.bf16.mxu0 %v1036
    %1431 = vmatpush1.bf16.msra.mxu0 %v1035
    %1432 = vmatprep.subr.bf16.mxu0 %v1040
    %1433 = vmatpush1.bf16.msra.mxu0 %v1039
    %1434 = vmatprep.subr.bf16.mxu0 %v1044
    %1435 = vmatpush1.bf16.msra.mxu0 %v1043
    %1436 = vmatprep.subr.bf16.mxu0 %v1048
    %1437 = vmatpush1.bf16.msra.mxu0 %v1047
    %1438 = vmatprep.subr.bf16.mxu0 %v1052
    %1439 = vmatpush1.bf16.msra.mxu0 %v1051
    %1440 = vmatprep.subr.bf16.mxu0 %v1056
    %1441 = vmatpush1.bf16.msra.mxu0 %v1055
    %1442 = vmatprep.subr.bf16.mxu0 %v1060
    %1443 = vmatpush1.bf16.msra.mxu0 %v1059
    %1444 = vmatprep.subr.bf16.mxu0 %v1064
    %1445 = vmatpush1.bf16.msra.mxu0 %v1063
    %1446 = vmatprep.subr.bf16.mxu0 %v1068
    %1447 = vmatpush1.bf16.msra.mxu0 %v1067
    %1448 = vmatprep.subr.bf16.mxu0 %v1072
    %1449 = vmatpush1.bf16.msra.mxu0 %v1071
    %1450 = vmatprep.subr.bf16.mxu0 %v1076
    %1451 = vmatpush1.bf16.msra.mxu0 %v1075
    %1452 = vmatprep.mubr.bf16.mxu0 %v376
    %1453 = vmatmul.mubr.bf16.gmra.mrb[0].mxu0 %v375
    %v1454 = vpop.f32.mrb[0].mxu0
    %v1455 = vadd.f32 0.0, %v1454
    %v1456 = vpop.f32.mrb[0].mxu0
    %v1457 = vadd.f32 0.0, %v1456
    %v1458 = vpop.f32.mrb[0].mxu0
    %v1459 = vadd.f32 0.0, %v1458
    %v1460 = vpop.f32.mrb[0].mxu0
    %v1461 = vadd.f32 0.0, %v1460
    %1462 = vmatprep.mubr.bf16.mxu0 %v383
    %1463 = vmatmul.mubr.bf16.gmra.mrb[0].mxu0 %v382
    %v1464 = vpop.f32.mrb[0].mxu0
    %v1465 = vadd.f32 0.0, %v1464
    %v1466 = vpop.f32.mrb[0].mxu0
    %v1467 = vadd.f32 0.0, %v1466
    %v1468 = vpop.f32.mrb[0].mxu0
    %v1469 = vadd.f32 0.0, %v1468
    %v1470 = vpop.f32.mrb[0].mxu0
    %v1471 = vadd.f32 0.0, %v1470
    %1472 = vmatprep.mubr.bf16.mxu0 %v390
    %1473 = vmatmul.mubr.bf16.gmra.mrb[0].mxu0 %v389
    %v1474 = vpop.f32.mrb[0].mxu0
    %v1475 = vadd.f32 0.0, %v1474
    %v1476 = vpop.f32.mrb[0].mxu0
    %v1477 = vadd.f32 0.0, %v1476
    %v1478 = vpop.f32.mrb[0].mxu0
    %v1479 = vadd.f32 0.0, %v1478
    %v1480 = vpop.f32.mrb[0].mxu0
    %v1481 = vadd.f32 0.0, %v1480
    %1482 = vmatprep.mubr.bf16.mxu0 %v397
    %1483 = vmatmul.mubr.bf16.gmra.mrb[0].mxu0 %v396
    %v1484 = vpop.f32.mrb[0].mxu0
    %v1485 = vadd.f32 0.0, %v1484
    %v1486 = vpop.f32.mrb[0].mxu0
    %v1487 = vadd.f32 0.0, %v1486
    %v1488 = vpop.f32.mrb[0].mxu0
    %v1489 = vadd.f32 0.0, %v1488
    %v1490 = vpop.f32.mrb[0].mxu0
    %v1491 = vadd.f32 0.0, %v1490
    %1492 = vdwg.mxu0
    %1493 = vmatprep.subr.bf16.mxu0 %v1080
    %1494 = vmatpush1.bf16.msra.mxu0 %v1079
    %1495 = vmatprep.subr.bf16.mxu0 %v1084
    %1496 = vmatpush1.bf16.msra.mxu0 %v1083
    %1497 = vmatprep.subr.bf16.mxu0 %v1088
    %1498 = vmatpush1.bf16.msra.mxu0 %v1087
    %1499 = vmatprep.subr.bf16.mxu0 %v1092
    %1500 = vmatpush1.bf16.msra.mxu0 %v1091
    %1501 = vmatprep.subr.bf16.mxu0 %v1096
    %1502 = vmatpush1.bf16.msra.mxu0 %v1095
    %1503 = vmatprep.subr.bf16.mxu0 %v1100
    %1504 = vmatpush1.bf16.msra.mxu0 %v1099
    %1505 = vmatprep.subr.bf16.mxu0 %v1104
    %1506 = vmatpush1.bf16.msra.mxu0 %v1103
    %1507 = vmatprep.subr.bf16.mxu0 %v1108
    %1508 = vmatpush1.bf16.msra.mxu0 %v1107
    %1509 = vmatprep.subr.bf16.mxu0 %v1112
    %1510 = vmatpush1.bf16.msra.mxu0 %v1111
    %1511 = vmatprep.subr.bf16.mxu0 %v1116
    %1512 = vmatpush1.bf16.msra.mxu0 %v1115
    %1513 = vmatprep.subr.bf16.mxu0 %v1120
    %1514 = vmatpush1.bf16.msra.mxu0 %v1119
    %1515 = vmatprep.subr.bf16.mxu0 %v1124
    %1516 = vmatpush1.bf16.msra.mxu0 %v1123
    %1517 = vmatprep.subr.bf16.mxu0 %v1128
    %1518 = vmatpush1.bf16.msra.mxu0 %v1127
    %1519 = vmatprep.subr.bf16.mxu0 %v1132
    %1520 = vmatpush1.bf16.msra.mxu0 %v1131
    %1521 = vmatprep.subr.bf16.mxu0 %v1136
    %1522 = vmatpush1.bf16.msra.mxu0 %v1135
    %1523 = vmatprep.subr.bf16.mxu0 %v1140
    %1524 = vmatpush1.bf16.msra.mxu0 %v1139
    %1525 = vmatprep.mubr.bf16.mxu0 %v378
    %1526 = vmatmul.mubr.bf16.gmra.mrb[0].mxu0 %v377
    %v1527 = vpop.f32.mrb[0].mxu0
    %v1528 = vadd.f32 %v1455, %v1527
    %v1529 = vpop.f32.mrb[0].mxu0
    %v1530 = vadd.f32 %v1457, %v1529
    %v1531 = vpop.f32.mrb[0].mxu0
    %v1532 = vadd.f32 %v1459, %v1531
    %v1533 = vpop.f32.mrb[0].mxu0
    %v1534 = vadd.f32 %v1461, %v1533
    %1535 = vmatprep.mubr.bf16.mxu0 %v385
    %1536 = vmatmul.mubr.bf16.gmra.mrb[0].mxu0 %v384
    %v1537 = vpop.f32.mrb[0].mxu0
    %v1538 = vadd.f32 %v1465, %v1537
    %v1539 = vpop.f32.mrb[0].mxu0
    %v1540 = vadd.f32 %v1467, %v1539
    %v1541 = vpop.f32.mrb[0].mxu0
    %v1542 = vadd.f32 %v1469, %v1541
    %v1543 = vpop.f32.mrb[0].mxu0
    %v1544 = vadd.f32 %v1471, %v1543
    %1545 = vmatprep.mubr.bf16.mxu0 %v392
    %1546 = vmatmul.mubr.bf16.gmra.mrb[0].mxu0 %v391
    %v1547 = vpop.f32.mrb[0].mxu0
    %v1548 = vadd.f32 %v1475, %v1547
    %v1549 = vpop.f32.mrb[0].mxu0
    %v1550 = vadd.f32 %v1477, %v1549
    %v1551 = vpop.f32.mrb[0].mxu0
    %v1552 = vadd.f32 %v1479, %v1551
    %v1553 = vpop.f32.mrb[0].mxu0
    %v1554 = vadd.f32 %v1481, %v1553
    %1555 = vmatprep.mubr.bf16.mxu0 %v399
    %1556 = vmatmul.mubr.bf16.gmra.mrb[0].mxu0 %v398
    %v1557 = vpop.f32.mrb[0].mxu0
    %v1558 = vadd.f32 %v1485, %v1557
    %v1559 = vpop.f32.mrb[0].mxu0
    %v1560 = vadd.f32 %v1487, %v1559
    %v1561 = vpop.f32.mrb[0].mxu0
    %v1562 = vadd.f32 %v1489, %v1561
    %v1563 = vpop.f32.mrb[0].mxu0
    %v1564 = vadd.f32 %v1491, %v1563
    %1565 = vdwg.mxu0
    %1566 = vmatprep.subr.bf16.mxu0 %v1144
    %1567 = vmatpush1.bf16.msra.mxu0 %v1143
    %1568 = vmatprep.subr.bf16.mxu0 %v1148
    %1569 = vmatpush1.bf16.msra.mxu0 %v1147
    %1570 = vmatprep.subr.bf16.mxu0 %v1152
    %1571 = vmatpush1.bf16.msra.mxu0 %v1151
    %1572 = vmatprep.subr.bf16.mxu0 %v1156
    %1573 = vmatpush1.bf16.msra.mxu0 %v1155
    %1574 = vmatprep.subr.bf16.mxu0 %v1160
    %1575 = vmatpush1.bf16.msra.mxu0 %v1159
    %1576 = vmatprep.subr.bf16.mxu0 %v1164
    %1577 = vmatpush1.bf16.msra.mxu0 %v1163
    %1578 = vmatprep.subr.bf16.mxu0 %v1168
    %1579 = vmatpush1.bf16.msra.mxu0 %v1167
    %1580 = vmatprep.subr.bf16.mxu0 %v1172
    %1581 = vmatpush1.bf16.msra.mxu0 %v1171
    %1582 = vmatprep.subr.bf16.mxu0 %v1176
    %1583 = vmatpush1.bf16.msra.mxu0 %v1175
    %1584 = vmatprep.subr.bf16.mxu0 %v1180
    %1585 = vmatpush1.bf16.msra.mxu0 %v1179
    %1586 = vmatprep.subr.bf16.mxu0 %v1184
    %1587 = vmatpush1.bf16.msra.mxu0 %v1183
    %1588 = vmatprep.subr.bf16.mxu0 %v1188
    %1589 = vmatpush1.bf16.msra.mxu0 %v1187
    %1590 = vmatprep.subr.bf16.mxu0 %v1192
    %1591 = vmatpush1.bf16.msra.mxu0 %v1191
    %1592 = vmatprep.subr.bf16.mxu0 %v1196
    %1593 = vmatpush1.bf16.msra.mxu0 %v1195
    %1594 = vmatprep.subr.bf16.mxu0 %v1200
    %1595 = vmatpush1.bf16.msra.mxu0 %v1199
    %1596 = vmatprep.subr.bf16.mxu0 %v1204
    %1597 = vmatpush1.bf16.msra.mxu0 %v1203
    %1598 = vmatprep.mubr.bf16.mxu0 %v380
    %1599 = vmatmul.mubr.bf16.gmra.mrb[0].mxu0 %v379
    %v1600 = vpop.f32.mrb[0].mxu0
    %v1601 = vadd.f32 %v1528, %v1600
    %v1602 = vpop.f32.mrb[0].mxu0
    %v1603 = vadd.f32 %v1530, %v1602
    %v1604 = vpop.f32.mrb[0].mxu0
    %v1605 = vadd.f32 %v1532, %v1604
    %v1606 = vpop.f32.mrb[0].mxu0
    %v1607 = vadd.f32 %v1534, %v1606
    %1608 = vmatprep.mubr.bf16.mxu0 %v387
    %1609 = vmatmul.mubr.bf16.gmra.mrb[0].mxu0 %v386
    %v1610 = vpop.f32.mrb[0].mxu0
    %v1611 = vadd.f32 %v1538, %v1610
    %v1612 = vpop.f32.mrb[0].mxu0
    %v1613 = vadd.f32 %v1540, %v1612
    %v1614 = vpop.f32.mrb[0].mxu0
    %v1615 = vadd.f32 %v1542, %v1614
    %v1616 = vpop.f32.mrb[0].mxu0
    %v1617 = vadd.f32 %v1544, %v1616
    %1618 = vmatprep.mubr.bf16.mxu0 %v394
    %1619 = vmatmul.mubr.bf16.gmra.mrb[0].mxu0 %v393
    %v1620 = vpop.f32.mrb[0].mxu0
    %v1621 = vadd.f32 %v1548, %v1620
    %v1622 = vpop.f32.mrb[0].mxu0
    %v1623 = vadd.f32 %v1550, %v1622
    %v1624 = vpop.f32.mrb[0].mxu0
    %v1625 = vadd.f32 %v1552, %v1624
    %v1626 = vpop.f32.mrb[0].mxu0
    %v1627 = vadd.f32 %v1554, %v1626
    %1628 = vmatprep.mubr.bf16.mxu0 %v401
    %1629 = vmatmul.mubr.bf16.gmra.mrb[0].mxu0 %v400
    %v1630 = vpop.f32.mrb[0].mxu0
    %v1631 = vadd.f32 %v1558, %v1630
    %v1632 = vpop.f32.mrb[0].mxu0
    %v1633 = vadd.f32 %v1560, %v1632
    %v1634 = vpop.f32.mrb[0].mxu0
    %v1635 = vadd.f32 %v1562, %v1634
    %v1636 = vpop.f32.mrb[0].mxu0
    %v1637 = vadd.f32 %v1564, %v1636
    %1638 = vdwg.mxu0
    %1639 = vmatprep.subr.bf16.mxu0 %v1208
    %1640 = vmatpush1.bf16.msra.mxu0 %v1207
    %1641 = vmatprep.subr.bf16.mxu0 0
    %1642 = vmatpush1.bf16.msra.mxu0 0
    %1643 = vmatprep.subr.bf16.mxu0 0
    %1644 = vmatpush1.bf16.msra.mxu0 0
    %1645 = vmatprep.subr.bf16.mxu0 0
    %1646 = vmatpush1.bf16.msra.mxu0 0
    %1647 = vmatprep.subr.bf16.mxu0 0
    %1648 = vmatpush1.bf16.msra.mxu0 0
    %1649 = vmatprep.subr.bf16.mxu0 0
    %1650 = vmatpush1.bf16.msra.mxu0 0
    %1651 = vmatprep.subr.bf16.mxu0 0
    %1652 = vmatpush1.bf16.msra.mxu0 0
    %1653 = vmatprep.subr.bf16.mxu0 0
    %1654 = vmatpush1.bf16.msra.mxu0 0
    %1655 = vmatprep.subr.bf16.mxu0 0
    %1656 = vmatpush1.bf16.msra.mxu0 0
    %1657 = vmatprep.subr.bf16.mxu0 0
    %1658 = vmatpush1.bf16.msra.mxu0 0
    %1659 = vmatprep.subr.bf16.mxu0 0
    %1660 = vmatpush1.bf16.msra.mxu0 0
    %1661 = vmatprep.subr.bf16.mxu0 0
    %1662 = vmatpush1.bf16.msra.mxu0 0
    %1663 = vmatprep.subr.bf16.mxu0 0
    %1664 = vmatpush1.bf16.msra.mxu0 0
    %1665 = vmatprep.subr.bf16.mxu0 0
    %1666 = vmatpush1.bf16.msra.mxu0 0
    %1667 = vmatprep.subr.bf16.mxu0 0
    %1668 = vmatpush1.bf16.msra.mxu0 0
    %1669 = vmatprep.subr.bf16.mxu0 0
    %1670 = vmatpush1.bf16.msra.mxu0 0
    %1671 = vmatprep.mubr.bf16.mxu0 0
    %1672 = vmatmul.mubr.bf16.gmra.mrb[0].mxu0 %v1409
    %v1673 = vpop.f32.mrb[0].mxu0
    %v1674 = vadd.f32 %v1601, %v1673
    %v1675 = vpop.f32.mrb[0].mxu0
    %v1676 = vadd.f32 %v1603, %v1675
    %v1677 = vpop.f32.mrb[0].mxu0
    %v1678 = vadd.f32 %v1605, %v1677
    %v1679 = vpop.f32.mrb[0].mxu0
    %v1680 = vadd.f32 %v1607, %v1679
    %1681 = vmatprep.mubr.bf16.mxu0 0
    %1682 = vmatmul.mubr.bf16.gmra.mrb[0].mxu0 %v1412
    %v1683 = vpop.f32.mrb[0].mxu0
    %v1684 = vadd.f32 %v1611, %v1683
    %v1685 = vpop.f32.mrb[0].mxu0
    %v1686 = vadd.f32 %v1613, %v1685
    %v1687 = vpop.f32.mrb[0].mxu0
    %v1688 = vadd.f32 %v1615, %v1687
    %v1689 = vpop.f32.mrb[0].mxu0
    %v1690 = vadd.f32 %v1617, %v1689
    %1691 = vmatprep.mubr.bf16.mxu0 0
    %1692 = vmatmul.mubr.bf16.gmra.mrb[0].mxu0 %v1415
    %v1693 = vpop.f32.mrb[0].mxu0
    %v1694 = vadd.f32 %v1621, %v1693
    %v1695 = vpop.f32.mrb[0].mxu0
    %v1696 = vadd.f32 %v1623, %v1695
    %v1697 = vpop.f32.mrb[0].mxu0
    %v1698 = vadd.f32 %v1625, %v1697
    %v1699 = vpop.f32.mrb[0].mxu0
    %v1700 = vadd.f32 %v1627, %v1699
    %1701 = vmatprep.mubr.bf16.mxu0 0
    %1702 = vmatmul.mubr.bf16.gmra.mrb[0].mxu0 %v1418
    %v1703 = vpop.f32.mrb[0].mxu0
    %v1704 = vadd.f32 %v1631, %v1703
    %v1705 = vpop.f32.mrb[0].mxu0
    %v1706 = vadd.f32 %v1633, %v1705
    %v1707 = vpop.f32.mrb[0].mxu0
    %v1708 = vadd.f32 %v1635, %v1707
    %v1709 = vpop.f32.mrb[0].mxu0
    %v1710 = vadd.f32 %v1637, %v1709
    %1711 = vdwg.mxu0
    %1712 = vmatprep.subr.bf16.mxu0 %v1018
    %1713 = vmatpush1.bf16.msra.mxu0 %v1017
    %1714 = vmatprep.subr.bf16.mxu0 %v1022
    %1715 = vmatpush1.bf16.msra.mxu0 %v1021
    %1716 = vmatprep.subr.bf16.mxu0 %v1026
    %1717 = vmatpush1.bf16.msra.mxu0 %v1025
    %1718 = vmatprep.subr.bf16.mxu0 %v1030
    %1719 = vmatpush1.bf16.msra.mxu0 %v1029
    %1720 = vmatprep.subr.bf16.mxu0 %v1034
    %1721 = vmatpush1.bf16.msra.mxu0 %v1033
    %1722 = vmatprep.subr.bf16.mxu0 %v1038
    %1723 = vmatpush1.bf16.msra.mxu0 %v1037
    %1724 = vmatprep.subr.bf16.mxu0 %v1042
    %1725 = vmatpush1.bf16.msra.mxu0 %v1041
    %1726 = vmatprep.subr.bf16.mxu0 %v1046
    %1727 = vmatpush1.bf16.msra.mxu0 %v1045
    %1728 = vmatprep.subr.bf16.mxu0 %v1050
    %1729 = vmatpush1.bf16.msra.mxu0 %v1049
    %1730 = vmatprep.subr.bf16.mxu0 %v1054
    %1731 = vmatpush1.bf16.msra.mxu0 %v1053
    %1732 = vmatprep.subr.bf16.mxu0 %v1058
    %1733 = vmatpush1.bf16.msra.mxu0 %v1057
    %1734 = vmatprep.subr.bf16.mxu0 %v1062
    %1735 = vmatpush1.bf16.msra.mxu0 %v1061
    %1736 = vmatprep.subr.bf16.mxu0 %v1066
    %1737 = vmatpush1.bf16.msra.mxu0 %v1065
    %1738 = vmatprep.subr.bf16.mxu0 %v1070
    %1739 = vmatpush1.bf16.msra.mxu0 %v1069
    %1740 = vmatprep.subr.bf16.mxu0 %v1074
    %1741 = vmatpush1.bf16.msra.mxu0 %v1073
    %1742 = vmatprep.subr.bf16.mxu0 %v1078
    %1743 = vmatpush1.bf16.msra.mxu0 %v1077
    %1744 = vmatprep.mubr.bf16.mxu0 %v376
    %1745 = vmatmul.mubr.bf16.gmra.mrb[0].mxu0 %v375
    %v1746 = vpop.f32.mrb[0].mxu0
    %v1747 = vadd.f32 0.0, %v1746
    %v1748 = vpop.f32.mrb[0].mxu0
    %v1749 = vadd.f32 0.0, %v1748
    %v1750 = vpop.f32.mrb[0].mxu0
    %v1751 = vadd.f32 0.0, %v1750
    %v1752 = vpop.f32.mrb[0].mxu0
    %v1753 = vadd.f32 0.0, %v1752
    %1754 = vmatprep.mubr.bf16.mxu0 %v383
    %1755 = vmatmul.mubr.bf16.gmra.mrb[0].mxu0 %v382
    %v1756 = vpop.f32.mrb[0].mxu0
    %v1757 = vadd.f32 0.0, %v1756
    %v1758 = vpop.f32.mrb[0].mxu0
    %v1759 = vadd.f32 0.0, %v1758
    %v1760 = vpop.f32.mrb[0].mxu0
    %v1761 = vadd.f32 0.0, %v1760
    %v1762 = vpop.f32.mrb[0].mxu0
    %v1763 = vadd.f32 0.0, %v1762
    %1764 = vmatprep.mubr.bf16.mxu0 %v390
    %1765 = vmatmul.mubr.bf16.gmra.mrb[0].mxu0 %v389
    %v1766 = vpop.f32.mrb[0].mxu0
    %v1767 = vadd.f32 0.0, %v1766
    %v1768 = vpop.f32.mrb[0].mxu0
    %v1769 = vadd.f32 0.0, %v1768
    %v1770 = vpop.f32.mrb[0].mxu0
    %v1771 = vadd.f32 0.0, %v1770
    %v1772 = vpop.f32.mrb[0].mxu0
    %v1773 = vadd.f32 0.0, %v1772
    %1774 = vmatprep.mubr.bf16.mxu0 %v397
    %1775 = vmatmul.mubr.bf16.gmra.mrb[0].mxu0 %v396
    %v1776 = vpop.f32.mrb[0].mxu0
    %v1777 = vadd.f32 0.0, %v1776
    %v1778 = vpop.f32.mrb[0].mxu0
    %v1779 = vadd.f32 0.0, %v1778
    %v1780 = vpop.f32.mrb[0].mxu0
    %v1781 = vadd.f32 0.0, %v1780
    %v1782 = vpop.f32.mrb[0].mxu0
    %v1783 = vadd.f32 0.0, %v1782
    %1784 = vdwg.mxu0
    %1785 = vmatprep.subr.bf16.mxu0 %v1082
    %1786 = vmatpush1.bf16.msra.mxu0 %v1081
    %1787 = vmatprep.subr.bf16.mxu0 %v1086
    %1788 = vmatpush1.bf16.msra.mxu0 %v1085
    %1789 = vmatprep.subr.bf16.mxu0 %v1090
    %1790 = vmatpush1.bf16.msra.mxu0 %v1089
    %1791 = vmatprep.subr.bf16.mxu0 %v1094
    %1792 = vmatpush1.bf16.msra.mxu0 %v1093
    %1793 = vmatprep.subr.bf16.mxu0 %v1098
    %1794 = vmatpush1.bf16.msra.mxu0 %v1097
    %1795 = vmatprep.subr.bf16.mxu0 %v1102
    %1796 = vmatpush1.bf16.msra.mxu0 %v1101
    %1797 = vmatprep.subr.bf16.mxu0 %v1106
    %1798 = vmatpush1.bf16.msra.mxu0 %v1105
    %1799 = vmatprep.subr.bf16.mxu0 %v1110
    %1800 = vmatpush1.bf16.msra.mxu0 %v1109
    %1801 = vmatprep.subr.bf16.mxu0 %v1114
    %1802 = vmatpush1.bf16.msra.mxu0 %v1113
    %1803 = vmatprep.subr.bf16.mxu0 %v1118
    %1804 = vmatpush1.bf16.msra.mxu0 %v1117
    %1805 = vmatprep.subr.bf16.mxu0 %v1122
    %1806 = vmatpush1.bf16.msra.mxu0 %v1121
    %1807 = vmatprep.subr.bf16.mxu0 %v1126
    %1808 = vmatpush1.bf16.msra.mxu0 %v1125
    %1809 = vmatprep.subr.bf16.mxu0 %v1130
    %1810 = vmatpush1.bf16.msra.mxu0 %v1129
    %1811 = vmatprep.subr.bf16.mxu0 %v1134
    %1812 = vmatpush1.bf16.msra.mxu0 %v1133
    %1813 = vmatprep.subr.bf16.mxu0 %v1138
    %1814 = vmatpush1.bf16.msra.mxu0 %v1137
    %1815 = vmatprep.subr.bf16.mxu0 %v1142
    %1816 = vmatpush1.bf16.msra.mxu0 %v1141
    %1817 = vmatprep.mubr.bf16.mxu0 %v378
    %1818 = vmatmul.mubr.bf16.gmra.mrb[0].mxu0 %v377
    %v1819 = vpop.f32.mrb[0].mxu0
    %v1820 = vadd.f32 %v1747, %v1819
    %v1821 = vpop.f32.mrb[0].mxu0
    %v1822 = vadd.f32 %v1749, %v1821
    %v1823 = vpop.f32.mrb[0].mxu0
    %v1824 = vadd.f32 %v1751, %v1823
    %v1825 = vpop.f32.mrb[0].mxu0
    %v1826 = vadd.f32 %v1753, %v1825
    %1827 = vmatprep.mubr.bf16.mxu0 %v385
    %1828 = vmatmul.mubr.bf16.gmra.mrb[0].mxu0 %v384
    %v1829 = vpop.f32.mrb[0].mxu0
    %v1830 = vadd.f32 %v1757, %v1829
    %v1831 = vpop.f32.mrb[0].mxu0
    %v1832 = vadd.f32 %v1759, %v1831
    %v1833 = vpop.f32.mrb[0].mxu0
    %v1834 = vadd.f32 %v1761, %v1833
    %v1835 = vpop.f32.mrb[0].mxu0
    %v1836 = vadd.f32 %v1763, %v1835
    %1837 = vmatprep.mubr.bf16.mxu0 %v392
    %1838 = vmatmul.mubr.bf16.gmra.mrb[0].mxu0 %v391
    %v1839 = vpop.f32.mrb[0].mxu0
    %v1840 = vadd.f32 %v1767, %v1839
    %v1841 = vpop.f32.mrb[0].mxu0
    %v1842 = vadd.f32 %v1769, %v1841
    %v1843 = vpop.f32.mrb[0].mxu0
    %v1844 = vadd.f32 %v1771, %v1843
    %v1845 = vpop.f32.mrb[0].mxu0
    %v1846 = vadd.f32 %v1773, %v1845
    %1847 = vmatprep.mubr.bf16.mxu0 %v399
    %1848 = vmatmul.mubr.bf16.gmra.mrb[0].mxu0 %v398
    %v1849 = vpop.f32.mrb[0].mxu0
    %v1850 = vadd.f32 %v1777, %v1849
    %v1851 = vpop.f32.mrb[0].mxu0
    %v1852 = vadd.f32 %v1779, %v1851
    %v1853 = vpop.f32.mrb[0].mxu0
    %v1854 = vadd.f32 %v1781, %v1853
    %v1855 = vpop.f32.mrb[0].mxu0
    %v1856 = vadd.f32 %v1783, %v1855
    %1857 = vdwg.mxu0
    %1858 = vmatprep.subr.bf16.mxu0 %v1146
    %1859 = vmatpush1.bf16.msra.mxu0 %v1145
    %1860 = vmatprep.subr.bf16.mxu0 %v1150
    %1861 = vmatpush1.bf16.msra.mxu0 %v1149
    %1862 = vmatprep.subr.bf16.mxu0 %v1154
    %1863 = vmatpush1.bf16.msra.mxu0 %v1153
    %1864 = vmatprep.subr.bf16.mxu0 %v1158
    %1865 = vmatpush1.bf16.msra.mxu0 %v1157
    %1866 = vmatprep.subr.bf16.mxu0 %v1162
    %1867 = vmatpush1.bf16.msra.mxu0 %v1161
    %1868 = vmatprep.subr.bf16.mxu0 %v1166
    %1869 = vmatpush1.bf16.msra.mxu0 %v1165
    %1870 = vmatprep.subr.bf16.mxu0 %v1170
    %1871 = vmatpush1.bf16.msra.mxu0 %v1169
    %1872 = vmatprep.subr.bf16.mxu0 %v1174
    %1873 = vmatpush1.bf16.msra.mxu0 %v1173
    %1874 = vmatprep.subr.bf16.mxu0 %v1178
    %1875 = vmatpush1.bf16.msra.mxu0 %v1177
    %1876 = vmatprep.subr.bf16.mxu0 %v1182
    %1877 = vmatpush1.bf16.msra.mxu0 %v1181
    %1878 = vmatprep.subr.bf16.mxu0 %v1186
    %1879 = vmatpush1.bf16.msra.mxu0 %v1185
    %1880 = vmatprep.subr.bf16.mxu0 %v1190
    %1881 = vmatpush1.bf16.msra.mxu0 %v1189
    %1882 = vmatprep.subr.bf16.mxu0 %v1194
    %1883 = vmatpush1.bf16.msra.mxu0 %v1193
    %1884 = vmatprep.subr.bf16.mxu0 %v1198
    %1885 = vmatpush1.bf16.msra.mxu0 %v1197
    %1886 = vmatprep.subr.bf16.mxu0 %v1202
    %1887 = vmatpush1.bf16.msra.mxu0 %v1201
    %1888 = vmatprep.subr.bf16.mxu0 %v1206
    %1889 = vmatpush1.bf16.msra.mxu0 %v1205
    %1890 = vmatprep.mubr.bf16.mxu0 %v380
    %1891 = vmatmul.mubr.bf16.gmra.mrb[0].mxu0 %v379
    %v1892 = vpop.f32.mrb[0].mxu0
    %v1893 = vadd.f32 %v1820, %v1892
    %v1894 = vpop.f32.mrb[0].mxu0
    %v1895 = vadd.f32 %v1822, %v1894
    %v1896 = vpop.f32.mrb[0].mxu0
    %v1897 = vadd.f32 %v1824, %v1896
    %v1898 = vpop.f32.mrb[0].mxu0
    %v1899 = vadd.f32 %v1826, %v1898
    %1900 = vmatprep.mubr.bf16.mxu0 %v387
    %1901 = vmatmul.mubr.bf16.gmra.mrb[0].mxu0 %v386
    %v1902 = vpop.f32.mrb[0].mxu0
    %v1903 = vadd.f32 %v1830, %v1902
    %v1904 = vpop.f32.mrb[0].mxu0
    %v1905 = vadd.f32 %v1832, %v1904
    %v1906 = vpop.f32.mrb[0].mxu0
    %v1907 = vadd.f32 %v1834, %v1906
    %v1908 = vpop.f32.mrb[0].mxu0
    %v1909 = vadd.f32 %v1836, %v1908
    %1910 = vmatprep.mubr.bf16.mxu0 %v394
    %1911 = vmatmul.mubr.bf16.gmra.mrb[0].mxu0 %v393
    %v1912 = vpop.f32.mrb[0].mxu0
    %v1913 = vadd.f32 %v1840, %v1912
    %v1914 = vpop.f32.mrb[0].mxu0
    %v1915 = vadd.f32 %v1842, %v1914
    %v1916 = vpop.f32.mrb[0].mxu0
    %v1917 = vadd.f32 %v1844, %v1916
    %v1918 = vpop.f32.mrb[0].mxu0
    %v1919 = vadd.f32 %v1846, %v1918
    %1920 = vmatprep.mubr.bf16.mxu0 %v401
    %1921 = vmatmul.mubr.bf16.gmra.mrb[0].mxu0 %v400
    %v1922 = vpop.f32.mrb[0].mxu0
    %v1923 = vadd.f32 %v1850, %v1922
    %v1924 = vpop.f32.mrb[0].mxu0
    %v1925 = vadd.f32 %v1852, %v1924
    %v1926 = vpop.f32.mrb[0].mxu0
    %v1927 = vadd.f32 %v1854, %v1926
    %v1928 = vpop.f32.mrb[0].mxu0
    %v1929 = vadd.f32 %v1856, %v1928
    %1930 = vdwg.mxu0
    %1931 = vmatprep.subr.bf16.mxu0 %v1210
    %1932 = vmatpush1.bf16.msra.mxu0 %v1209
    %1933 = vmatprep.subr.bf16.mxu0 0
    %1934 = vmatpush1.bf16.msra.mxu0 0
    %1935 = vmatprep.subr.bf16.mxu0 0
    %1936 = vmatpush1.bf16.msra.mxu0 0
    %1937 = vmatprep.subr.bf16.mxu0 0
    %1938 = vmatpush1.bf16.msra.mxu0 0
    %1939 = vmatprep.subr.bf16.mxu0 0
    %1940 = vmatpush1.bf16.msra.mxu0 0
    %1941 = vmatprep.subr.bf16.mxu0 0
    %1942 = vmatpush1.bf16.msra.mxu0 0
    %1943 = vmatprep.subr.bf16.mxu0 0
    %1944 = vmatpush1.bf16.msra.mxu0 0
    %1945 = vmatprep.subr.bf16.mxu0 0
    %1946 = vmatpush1.bf16.msra.mxu0 0
    %1947 = vmatprep.subr.bf16.mxu0 0
    %1948 = vmatpush1.bf16.msra.mxu0 0
    %1949 = vmatprep.subr.bf16.mxu0 0
    %1950 = vmatpush1.bf16.msra.mxu0 0
    %1951 = vmatprep.subr.bf16.mxu0 0
    %1952 = vmatpush1.bf16.msra.mxu0 0
    %1953 = vmatprep.subr.bf16.mxu0 0
    %1954 = vmatpush1.bf16.msra.mxu0 0
    %1955 = vmatprep.subr.bf16.mxu0 0
    %1956 = vmatpush1.bf16.msra.mxu0 0
    %1957 = vmatprep.subr.bf16.mxu0 0
    %1958 = vmatpush1.bf16.msra.mxu0 0
    %1959 = vmatprep.subr.bf16.mxu0 0
    %1960 = vmatpush1.bf16.msra.mxu0 0
    %1961 = vmatprep.subr.bf16.mxu0 0
    %1962 = vmatpush1.bf16.msra.mxu0 0
    %1963 = vmatprep.mubr.bf16.mxu0 0
    %1964 = vmatmul.mubr.bf16.gmra.mrb[0].mxu0 %v1409
    %v1965 = vpop.f32.mrb[0].mxu0
    %v1966 = vadd.f32 %v1893, %v1965
    %v1967 = vpop.f32.mrb[0].mxu0
    %v1968 = vadd.f32 %v1895, %v1967
    %v1969 = vpop.f32.mrb[0].mxu0
    %v1970 = vadd.f32 %v1897, %v1969
    %v1971 = vpop.f32.mrb[0].mxu0
    %v1972 = vadd.f32 %v1899, %v1971
    %1973 = vmatprep.mubr.bf16.mxu0 0
    %1974 = vmatmul.mubr.bf16.gmra.mrb[0].mxu0 %v1412
    %v1975 = vpop.f32.mrb[0].mxu0
    %v1976 = vadd.f32 %v1903, %v1975
    %v1977 = vpop.f32.mrb[0].mxu0
    %v1978 = vadd.f32 %v1905, %v1977
    %v1979 = vpop.f32.mrb[0].mxu0
    %v1980 = vadd.f32 %v1907, %v1979
    %v1981 = vpop.f32.mrb[0].mxu0
    %v1982 = vadd.f32 %v1909, %v1981
    %1983 = vmatprep.mubr.bf16.mxu0 0
    %1984 = vmatmul.mubr.bf16.gmra.mrb[0].mxu0 %v1415
    %v1985 = vpop.f32.mrb[0].mxu0
    %v1986 = vadd.f32 %v1913, %v1985
    %v1987 = vpop.f32.mrb[0].mxu0
    %v1988 = vadd.f32 %v1915, %v1987
    %v1989 = vpop.f32.mrb[0].mxu0
    %v1990 = vadd.f32 %v1917, %v1989
    %v1991 = vpop.f32.mrb[0].mxu0
    %v1992 = vadd.f32 %v1919, %v1991
    %1993 = vmatprep.mubr.bf16.mxu0 0
    %1994 = vmatmul.mubr.bf16.gmra.mrb[0].mxu0 %v1418
    %v1995 = vpop.f32.mrb[0].mxu0
    %v1996 = vadd.f32 %v1923, %v1995
    %v1997 = vpop.f32.mrb[0].mxu0
    %v1998 = vadd.f32 %v1925, %v1997
    %v1999 = vpop.f32.mrb[0].mxu0
    %v2000 = vadd.f32 %v1927, %v1999
    %v2001 = vpop.f32.mrb[0].mxu0
    %v2002 = vadd.f32 %v1929, %v2001
    %2003 = vdwg.mxu0
    %v2004 = vadd.f32 %v1674, %v1678
    %v2005 = vadd.f32 %v2004, %v1684
    %v2006 = vadd.f32 %v2005, %v1688
    %v2007 = vadd.f32 %v2006, %v1694
    %v2008 = vadd.f32 %v2007, %v1698
    %v2009 = vadd.f32 %v2008, %v1704
    %v2010 = vadd.f32 %v2009, %v1708
    %v2011 = vrot.slane %v2010, 4
    %v2012 = vadd.f32 %v2010, %v2011
    %v2013 = vrot.slane %v2012, 2
    %v2014 = vadd.f32 %v2012, %v2013
    %v2015 = vrot.slane %v2014, 1
    %v2016 = vadd.f32 %v2014, %v2015
    %v2017 = vadd.f32 %v1676, %v1680
    %v2018 = vadd.f32 %v2017, %v1686
    %v2019 = vadd.f32 %v2018, %v1690
    %v2020 = vadd.f32 %v2019, %v1696
    %v2021 = vadd.f32 %v2020, %v1700
    %v2022 = vadd.f32 %v2021, %v1706
    %v2023 = vadd.f32 %v2022, %v1710
    %v2024 = vrot.slane %v2023, 4
    %v2025 = vadd.f32 %v2023, %v2024
    %v2026 = vrot.slane %v2025, 2
    %v2027 = vadd.f32 %v2025, %v2026
    %v2028 = vrot.slane %v2027, 1
    %v2029 = vadd.f32 %v2027, %v2028
    %v2030 = vadd.f32 %v1966, %v1970
    %v2031 = vadd.f32 %v2030, %v1976
    %v2032 = vadd.f32 %v2031, %v1980
    %v2033 = vadd.f32 %v2032, %v1986
    %v2034 = vadd.f32 %v2033, %v1990
    %v2035 = vadd.f32 %v2034, %v1996
    %v2036 = vadd.f32 %v2035, %v2000
    %v2037 = vrot.slane %v2036, 4
    %v2038 = vadd.f32 %v2036, %v2037
    %v2039 = vrot.slane %v2038, 2
    %v2040 = vadd.f32 %v2038, %v2039
    %v2041 = vrot.slane %v2040, 1
    %v2042 = vadd.f32 %v2040, %v2041
    %v2043 = vadd.f32 %v1968, %v1972
    %v2044 = vadd.f32 %v2043, %v1978
    %v2045 = vadd.f32 %v2044, %v1982
    %v2046 = vadd.f32 %v2045, %v1988
    %v2047 = vadd.f32 %v2046, %v1992
    %v2048 = vadd.f32 %v2047, %v1998
    %v2049 = vadd.f32 %v2048, %v2002
    %v2050 = vrot.slane %v2049, 4
    %v2051 = vadd.f32 %v2049, %v2050
    %v2052 = vrot.slane %v2051, 2
    %v2053 = vadd.f32 %v2051, %v2052
    %v2054 = vrot.slane %v2053, 1
    %v2055 = vadd.f32 %v2053, %v2054
    %v2056 = vmul.f32 %v1674, %v1674
    %v2057 = vmul.f32 %v1676, %v1676
    %v2058 = vmul.f32 %v1966, %v1966
    %v2059 = vmul.f32 %v1968, %v1968
    %v2060 = vmul.f32 %v1678, %v1678
    %v2061 = vmul.f32 %v1680, %v1680
    %v2062 = vmul.f32 %v1970, %v1970
    %v2063 = vmul.f32 %v1972, %v1972
    %v2064 = vmul.f32 %v1684, %v1684
    %v2065 = vmul.f32 %v1686, %v1686
    %v2066 = vmul.f32 %v1976, %v1976
    %v2067 = vmul.f32 %v1978, %v1978
    %v2068 = vmul.f32 %v1688, %v1688
    %v2069 = vmul.f32 %v1690, %v1690
    %v2070 = vmul.f32 %v1980, %v1980
    %v2071 = vmul.f32 %v1982, %v1982
    %v2072 = vmul.f32 %v1694, %v1694
    %v2073 = vmul.f32 %v1696, %v1696
    %v2074 = vmul.f32 %v1986, %v1986
    %v2075 = vmul.f32 %v1988, %v1988
    %v2076 = vmul.f32 %v1698, %v1698
    %v2077 = vmul.f32 %v1700, %v1700
    %v2078 = vmul.f32 %v1990, %v1990
    %v2079 = vmul.f32 %v1992, %v1992
    %v2080 = vmul.f32 %v1704, %v1704
    %v2081 = vmul.f32 %v1706, %v1706
    %v2082 = vmul.f32 %v1996, %v1996
    %v2083 = vmul.f32 %v1998, %v1998
    %v2084 = vmul.f32 %v1708, %v1708
    %v2085 = vmul.f32 %v1710, %v1710
    %v2086 = vmul.f32 %v2000, %v2000
    %v2087 = vmul.f32 %v2002, %v2002
    %v2088 = vadd.f32 %v2056, %v2060
    %v2089 = vadd.f32 %v2088, %v2064
    %v2090 = vadd.f32 %v2089, %v2068
    %v2091 = vadd.f32 %v2090, %v2072
    %v2092 = vadd.f32 %v2091, %v2076
    %v2093 = vadd.f32 %v2092, %v2080
    %v2094 = vadd.f32 %v2093, %v2084
    %v2095 = vrot.slane %v2094, 4
    %v2096 = vadd.f32 %v2094, %v2095
    %v2097 = vrot.slane %v2096, 2
    %v2098 = vadd.f32 %v2096, %v2097
    %v2099 = vrot.slane %v2098, 1
    %v2100 = vadd.f32 %v2098, %v2099
    %v2101 = vadd.f32 %v2057, %v2061
    %v2102 = vadd.f32 %v2101, %v2065
    %v2103 = vadd.f32 %v2102, %v2069
    %v2104 = vadd.f32 %v2103, %v2073
    %v2105 = vadd.f32 %v2104, %v2077
    %v2106 = vadd.f32 %v2105, %v2081
    %v2107 = vadd.f32 %v2106, %v2085
    %v2108 = vrot.slane %v2107, 4
    %v2109 = vadd.f32 %v2107, %v2108
    %v2110 = vrot.slane %v2109, 2
    %v2111 = vadd.f32 %v2109, %v2110
    %v2112 = vrot.slane %v2111, 1
    %v2113 = vadd.f32 %v2111, %v2112
    %v2114 = vadd.f32 %v2058, %v2062
    %v2115 = vadd.f32 %v2114, %v2066
    %v2116 = vadd.f32 %v2115, %v2070
    %v2117 = vadd.f32 %v2116, %v2074
    %v2118 = vadd.f32 %v2117, %v2078
    %v2119 = vadd.f32 %v2118, %v2082
    %v2120 = vadd.f32 %v2119, %v2086
    %v2121 = vrot.slane %v2120, 4
    %v2122 = vadd.f32 %v2120, %v2121
    %v2123 = vrot.slane %v2122, 2
    %v2124 = vadd.f32 %v2122, %v2123
    %v2125 = vrot.slane %v2124, 1
    %v2126 = vadd.f32 %v2124, %v2125
    %v2127 = vadd.f32 %v2059, %v2063
    %v2128 = vadd.f32 %v2127, %v2067
    %v2129 = vadd.f32 %v2128, %v2071
    %v2130 = vadd.f32 %v2129, %v2075
    %v2131 = vadd.f32 %v2130, %v2079
    %v2132 = vadd.f32 %v2131, %v2083
    %v2133 = vadd.f32 %v2132, %v2087
    %v2134 = vrot.slane %v2133, 4
    %v2135 = vadd.f32 %v2133, %v2134
    %v2136 = vrot.slane %v2135, 2
    %v2137 = vadd.f32 %v2135, %v2136
    %v2138 = vrot.slane %v2137, 1
    %v2139 = vadd.f32 %v2137, %v2138
    %v2140 = vmul.f32 %v2016, 0.015625
    %v2141 = vmul.f32 %v2029, 0.015625
    %v2142 = vmul.f32 %v2042, 0.015625
    %v2143 = vmul.f32 %v2055, 0.015625
    %v2144 = vmul.f32 %v2100, 0.015625
    %v2145 = vmul.f32 %v2113, 0.015625
    %v2146 = vmul.f32 %v2126, 0.015625
    %v2147 = vmul.f32 %v2139, 0.015625
    %v2148 = vmul.f32 %v2140, %v2140
    %v2149 = vmul.f32 %v2141, %v2141
    %v2150 = vmul.f32 %v2142, %v2142
    %v2151 = vmul.f32 %v2143, %v2143
    %v2152 = vsub.f32 %v2144, %v2148
    %v2153 = vsub.f32 %v2145, %v2149
    %v2154 = vsub.f32 %v2146, %v2150
    %v2155 = vsub.f32 %v2147, %v2151
    %v2156 = vmax.f32 %v2152, 0.0
    %v2157 = vmax.f32 %v2153, 0.0
    %v2158 = vmax.f32 %v2154, 0.0
    %v2159 = vmax.f32 %v2155, 0.0
    %v2160 = vsub.f32 %v1674, %v2140
    %v2161 = vsub.f32 %v1676, %v2141
    %v2162 = vsub.f32 %v1966, %v2142
    %v2163 = vsub.f32 %v1968, %v2143
    %v2164 = vsub.f32 %v1678, %v2140
    %v2165 = vsub.f32 %v1680, %v2141
    %v2166 = vsub.f32 %v1970, %v2142
    %v2167 = vsub.f32 %v1972, %v2143
    %v2168 = vsub.f32 %v1684, %v2140
    %v2169 = vsub.f32 %v1686, %v2141
    %v2170 = vsub.f32 %v1976, %v2142
    %v2171 = vsub.f32 %v1978, %v2143
    %v2172 = vsub.f32 %v1688, %v2140
    %v2173 = vsub.f32 %v1690, %v2141
    %v2174 = vsub.f32 %v1980, %v2142
    %v2175 = vsub.f32 %v1982, %v2143
    %v2176 = vsub.f32 %v1694, %v2140
    %v2177 = vsub.f32 %v1696, %v2141
    %v2178 = vsub.f32 %v1986, %v2142
    %v2179 = vsub.f32 %v1988, %v2143
    %v2180 = vsub.f32 %v1698, %v2140
    %v2181 = vsub.f32 %v1700, %v2141
    %v2182 = vsub.f32 %v1990, %v2142
    %v2183 = vsub.f32 %v1992, %v2143
    %v2184 = vsub.f32 %v1704, %v2140
    %v2185 = vsub.f32 %v1706, %v2141
    %v2186 = vsub.f32 %v1996, %v2142
    %v2187 = vsub.f32 %v1998, %v2143
    %v2188 = vsub.f32 %v1708, %v2140
    %v2189 = vsub.f32 %v1710, %v2141
    %v2190 = vsub.f32 %v2000, %v2142
    %v2191 = vsub.f32 %v2002, %v2143
    %v2192 = vadd.f32 %v2156, 1e-05
    %v2193 = vadd.f32 %v2157, 1e-05
    %v2194 = vadd.f32 %v2158, 1e-05
    %v2195 = vadd.f32 %v2159, 1e-05
    %v2196 = vrsqrt.pop %v2192
    %v2197 = vrsqrt.pop %v2193
    %v2198 = vrsqrt.pop %v2194
    %v2199 = vrsqrt.pop %v2195
    %v2200 = vmul.f32 %v2160, %v2196
    %v2201 = vmul.f32 %v2161, %v2197
    %v2202 = vmul.f32 %v2162, %v2198
    %v2203 = vmul.f32 %v2163, %v2199
    %v2204 = vmul.f32 %v2164, %v2196
    %v2205 = vmul.f32 %v2165, %v2197
    %v2206 = vmul.f32 %v2166, %v2198
    %v2207 = vmul.f32 %v2167, %v2199
    %v2208 = vmul.f32 %v2168, %v2196
    %v2209 = vmul.f32 %v2169, %v2197
    %v2210 = vmul.f32 %v2170, %v2198
    %v2211 = vmul.f32 %v2171, %v2199
    %v2212 = vmul.f32 %v2172, %v2196
    %v2213 = vmul.f32 %v2173, %v2197
    %v2214 = vmul.f32 %v2174, %v2198
    %v2215 = vmul.f32 %v2175, %v2199
    %v2216 = vmul.f32 %v2176, %v2196
    %v2217 = vmul.f32 %v2177, %v2197
    %v2218 = vmul.f32 %v2178, %v2198
    %v2219 = vmul.f32 %v2179, %v2199
    %v2220 = vmul.f32 %v2180, %v2196
    %v2221 = vmul.f32 %v2181, %v2197
    %v2222 = vmul.f32 %v2182, %v2198
    %v2223 = vmul.f32 %v2183, %v2199
    %v2224 = vmul.f32 %v2184, %v2196
    %v2225 = vmul.f32 %v2185, %v2197
    %v2226 = vmul.f32 %v2186, %v2198
    %v2227 = vmul.f32 %v2187, %v2199
    %v2228 = vmul.f32 %v2188, %v2196
    %v2229 = vmul.f32 %v2189, %v2197
    %v2230 = vmul.f32 %v2190, %v2198
    %v2231 = vmul.f32 %v2191, %v2199
    %v2232 = vmul.f32 %v2200, 0.2
    %v2233 = vmul.f32 %v2201, 0.2
    %v2234 = vmul.f32 %v2202, 0.2
    %v2235 = vmul.f32 %v2203, 0.2
    %v2236 = vmul.f32 %v2204, 0.2
    %v2237 = vmul.f32 %v2205, 0.2
    %v2238 = vmul.f32 %v2206, 0.2
    %v2239 = vmul.f32 %v2207, 0.2
    %v2240 = vmul.f32 %v2208, 0.2
    %v2241 = vmul.f32 %v2209, 0.2
    %v2242 = vmul.f32 %v2210, 0.2
    %v2243 = vmul.f32 %v2211, 0.2
    %v2244 = vmul.f32 %v2212, 0.2
    %v2245 = vmul.f32 %v2213, 0.2
    %v2246 = vmul.f32 %v2214, 0.2
    %v2247 = vmul.f32 %v2215, 0.2
    %v2248 = vmul.f32 %v2216, 0.2
    %v2249 = vmul.f32 %v2217, 0.2
    %v2250 = vmul.f32 %v2218, 0.2
    %v2251 = vmul.f32 %v2219, 0.2
    %v2252 = vmul.f32 %v2220, 0.2
    %v2253 = vmul.f32 %v2221, 0.2
    %v2254 = vmul.f32 %v2222, 0.2
    %v2255 = vmul.f32 %v2223, 0.2
    %v2256 = vmul.f32 %v2224, 0.2
    %v2257 = vmul.f32 %v2225, 0.2
    %v2258 = vmul.f32 %v2226, 0.2
    %v2259 = vmul.f32 %v2227, 0.2
    %v2260 = vmul.f32 %v2228, 0.2
    %v2261 = vmul.f32 %v2229, 0.2
    %v2262 = vmul.f32 %v2230, 0.2
    %v2263 = vmul.f32 %v2231, 0.2
    %v2264 = vmax.f32 %v2200, %v2232
    %v2265 = vmax.f32 %v2201, %v2233
    %v2266 = vmax.f32 %v2202, %v2234
    %v2267 = vmax.f32 %v2203, %v2235
    %v2268 = vmax.f32 %v2204, %v2236
    %v2269 = vmax.f32 %v2205, %v2237
    %v2270 = vmax.f32 %v2206, %v2238
    %v2271 = vmax.f32 %v2207, %v2239
    %v2272 = vmax.f32 %v2208, %v2240
    %v2273 = vmax.f32 %v2209, %v2241
    %v2274 = vmax.f32 %v2210, %v2242
    %v2275 = vmax.f32 %v2211, %v2243
    %v2276 = vmax.f32 %v2212, %v2244
    %v2277 = vmax.f32 %v2213, %v2245
    %v2278 = vmax.f32 %v2214, %v2246
    %v2279 = vmax.f32 %v2215, %v2247
    %v2280 = vmax.f32 %v2216, %v2248
    %v2281 = vmax.f32 %v2217, %v2249
    %v2282 = vmax.f32 %v2218, %v2250
    %v2283 = vmax.f32 %v2219, %v2251
    %v2284 = vmax.f32 %v2220, %v2252
    %v2285 = vmax.f32 %v2221, %v2253
    %v2286 = vmax.f32 %v2222, %v2254
    %v2287 = vmax.f32 %v2223, %v2255
    %v2288 = vmax.f32 %v2224, %v2256
    %v2289 = vmax.f32 %v2225, %v2257
    %v2290 = vmax.f32 %v2226, %v2258
    %v2291 = vmax.f32 %v2227, %v2259
    %v2292 = vmax.f32 %v2228, %v2260
    %v2293 = vmax.f32 %v2229, %v2261
    %v2294 = vmax.f32 %v2230, %v2262
    %v2295 = vmax.f32 %v2231, %v2263
    %v2296 = vpack.c.bf16 %v2268, %v2264
    %v2297 = vpack.c.bf16 %v2269, %v2265
    %v2298 = vpack.c.bf16 %v2270, %v2266
    %v2299 = vpack.c.bf16 %v2271, %v2267
    %v2300 = vpack.c.bf16 %v2276, %v2272
    %v2301 = vpack.c.bf16 %v2277, %v2273
    %v2302 = vpack.c.bf16 %v2278, %v2274
    %v2303 = vpack.c.bf16 %v2279, %v2275
    %v2304 = vpack.c.bf16 %v2284, %v2280
    %v2305 = vpack.c.bf16 %v2285, %v2281
    %v2306 = vpack.c.bf16 %v2286, %v2282
    %v2307 = vpack.c.bf16 %v2287, %v2283
    %v2308 = vpack.c.bf16 %v2292, %v2288
    %v2309 = vpack.c.bf16 %v2293, %v2289
    %v2310 = vpack.c.bf16 %v2294, %v2290
    %v2311 = vpack.c.bf16 %v2295, %v2291
    %v2312 = vld [vmem:[#allocation6] sm:$0xff]
    %v2313 = vld [vmem:[#allocation6 + $0x8] sm:$0xff]
    %v2314 = vld [vmem:[#allocation6 + $0x10] sm:$0xff]
    %v2315 = vld [vmem:[#allocation6 + $0x18] sm:$0xff]
    %v2316 = vld [vmem:[#allocation6 + $0x20] sm:$0xff]
    %v2317 = vld [vmem:[#allocation6 + $0x28] sm:$0xff]
    %v2318 = vld [vmem:[#allocation6 + $0x30] sm:$0xff]
    %v2319 = vld [vmem:[#allocation6 + $0x38] sm:$0xff]
    %v2320 = vld [vmem:[#allocation6 + $0x40] sm:$0xff]
    %v2321 = vld [vmem:[#allocation6 + $0x48] sm:$0xff]
    %v2322 = vld [vmem:[#allocation6 + $0x50] sm:$0xff]
    %v2323 = vld [vmem:[#allocation6 + $0x58] sm:$0xff]
    %v2324 = vld [vmem:[#allocation6 + $0x60] sm:$0xff]
    %v2325 = vld [vmem:[#allocation6 + $0x68] sm:$0xff]
    %v2326 = vld [vmem:[#allocation6 + $0x70] sm:$0xff]
    %v2327 = vld [vmem:[#allocation6 + $0x78] sm:$0xff]
    %v2328 = vld [vmem:[#allocation6 + $0x80] sm:$0xff]
    %v2329 = vld [vmem:[#allocation6 + $0x88] sm:$0xff]
    %v2330 = vld [vmem:[#allocation6 + $0x90] sm:$0xff]
    %v2331 = vld [vmem:[#allocation6 + $0x98] sm:$0xff]
    %v2332 = vld [vmem:[#allocation6 + $0xa0] sm:$0xff]
    %v2333 = vld [vmem:[#allocation6 + $0xa8] sm:$0xff]
    %v2334 = vld [vmem:[#allocation6 + $0xb0] sm:$0xff]
    %v2335 = vld [vmem:[#allocation6 + $0xb8] sm:$0xff]
    %v2336 = vld [vmem:[#allocation6 + $0xc0] sm:$0xff]
    %v2337 = vld [vmem:[#allocation6 + $0xc8] sm:$0xff]
    %v2338 = vld [vmem:[#allocation6 + $0xd0] sm:$0xff]
    %v2339 = vld [vmem:[#allocation6 + $0xd8] sm:$0xff]
    %v2340 = vld [vmem:[#allocation6 + $0xe0] sm:$0xff]
    %v2341 = vld [vmem:[#allocation6 + $0xe8] sm:$0xff]
    %v2342 = vld [vmem:[#allocation6 + $0xf0] sm:$0xff]
    %v2343 = vld [vmem:[#allocation6 + $0xf8] sm:$0xff]
    %v2344 = vld [vmem:[#allocation6 + $0x100] sm:$0xff]
    %v2345 = vld [vmem:[#allocation6 + $0x108] sm:$0xff]
    %v2346 = vld [vmem:[#allocation6 + $0x110] sm:$0xff]
    %v2347 = vld [vmem:[#allocation6 + $0x118] sm:$0xff]
    %v2348 = vld [vmem:[#allocation6 + $0x120] sm:$0xff]
    %v2349 = vld [vmem:[#allocation6 + $0x128] sm:$0xff]
    %v2350 = vld [vmem:[#allocation6 + $0x130] sm:$0xff]
    %v2351 = vld [vmem:[#allocation6 + $0x138] sm:$0xff]
    %v2352 = vld [vmem:[#allocation6 + $0x140] sm:$0xff]
    %v2353 = vld [vmem:[#allocation6 + $0x148] sm:$0xff]
    %v2354 = vld [vmem:[#allocation6 + $0x150] sm:$0xff]
    %v2355 = vld [vmem:[#allocation6 + $0x158] sm:$0xff]
    %v2356 = vld [vmem:[#allocation6 + $0x160] sm:$0xff]
    %v2357 = vld [vmem:[#allocation6 + $0x168] sm:$0xff]
    %v2358 = vld [vmem:[#allocation6 + $0x170] sm:$0xff]
    %v2359 = vld [vmem:[#allocation6 + $0x178] sm:$0xff]
    %v2360 = vld [vmem:[#allocation6 + $0x180] sm:$0xff]
    %v2361 = vld [vmem:[#allocation6 + $0x188] sm:$0xff]
    %v2362 = vld [vmem:[#allocation6 + $0x190] sm:$0xff]
    %v2363 = vld [vmem:[#allocation6 + $0x198] sm:$0xff]
    %v2364 = vld [vmem:[#allocation6 + $0x1a0] sm:$0xff]
    %v2365 = vld [vmem:[#allocation6 + $0x1a8] sm:$0xff]
    %v2366 = vld [vmem:[#allocation6 + $0x1b0] sm:$0xff]
    %v2367 = vld [vmem:[#allocation6 + $0x1b8] sm:$0xff]
    %v2368 = vld [vmem:[#allocation6 + $0x1c0] sm:$0xff]
    %v2369 = vld [vmem:[#allocation6 + $0x1c8] sm:$0xff]
    %v2370 = vld [vmem:[#allocation6 + $0x1d0] sm:$0xff]
    %v2371 = vld [vmem:[#allocation6 + $0x1d8] sm:$0xff]
    %v2372 = vld [vmem:[#allocation6 + $0x1e0] sm:$0xff]
    %v2373 = vld [vmem:[#allocation6 + $0x1e8] sm:$0xff]
    %v2374 = vld [vmem:[#allocation6 + $0x1f0] sm:$0xff]
    %v2375 = vld [vmem:[#allocation6 + $0x1f8] sm:$0xff]
    %v2440 = vunpack.c.l.b16 %v2312
    %v2441 = vunpack.c.h.b16 %v2312
    %v2442 = vunpack.c.l.b16 %v2313
    %v2443 = vunpack.c.h.b16 %v2313
    %v2444 = vunpack.c.l.b16 %v2314
    %v2445 = vunpack.c.h.b16 %v2314
    %v2446 = vunpack.c.l.b16 %v2315
    %v2447 = vunpack.c.h.b16 %v2315
    %v2448 = vunpack.c.l.b16 %v2316
    %v2449 = vunpack.c.h.b16 %v2316
    %v2450 = vunpack.c.l.b16 %v2317
    %v2451 = vunpack.c.h.b16 %v2317
    %v2452 = vunpack.c.l.b16 %v2318
    %v2453 = vunpack.c.h.b16 %v2318
    %v2454 = vunpack.c.l.b16 %v2319
    %v2455 = vunpack.c.h.b16 %v2319
    %v2456 = vunpack.c.l.b16 %v2320
    %v2457 = vunpack.c.h.b16 %v2320
    %v2458 = vunpack.c.l.b16 %v2321
    %v2459 = vunpack.c.h.b16 %v2321
    %v2460 = vunpack.c.l.b16 %v2322
    %v2461 = vunpack.c.h.b16 %v2322
    %v2462 = vunpack.c.l.b16 %v2323
    %v2463 = vunpack.c.h.b16 %v2323
    %v2464 = vunpack.c.l.b16 %v2324
    %v2465 = vunpack.c.h.b16 %v2324
    %v2466 = vunpack.c.l.b16 %v2325
    %v2467 = vunpack.c.h.b16 %v2325
    %v2468 = vunpack.c.l.b16 %v2326
    %v2469 = vunpack.c.h.b16 %v2326
    %v2470 = vunpack.c.l.b16 %v2327
    %v2471 = vunpack.c.h.b16 %v2327
    %v2472 = vunpack.c.l.b16 %v2328
    %v2473 = vunpack.c.h.b16 %v2328
    %v2474 = vunpack.c.l.b16 %v2329
    %v2475 = vunpack.c.h.b16 %v2329
    %v2476 = vunpack.c.l.b16 %v2330
    %v2477 = vunpack.c.h.b16 %v2330
    %v2478 = vunpack.c.l.b16 %v2331
    %v2479 = vunpack.c.h.b16 %v2331
    %v2480 = vunpack.c.l.b16 %v2332
    %v2481 = vunpack.c.h.b16 %v2332
    %v2482 = vunpack.c.l.b16 %v2333
    %v2483 = vunpack.c.h.b16 %v2333
    %v2484 = vunpack.c.l.b16 %v2334
    %v2485 = vunpack.c.h.b16 %v2334
    %v2486 = vunpack.c.l.b16 %v2335
    %v2487 = vunpack.c.h.b16 %v2335
    %v2488 = vunpack.c.l.b16 %v2336
    %v2489 = vunpack.c.h.b16 %v2336
    %v2490 = vunpack.c.l.b16 %v2337
    %v2491 = vunpack.c.h.b16 %v2337
    %v2492 = vunpack.c.l.b16 %v2338
    %v2493 = vunpack.c.h.b16 %v2338
    %v2494 = vunpack.c.l.b16 %v2339
    %v2495 = vunpack.c.h.b16 %v2339
    %v2496 = vunpack.c.l.b16 %v2340
    %v2497 = vunpack.c.h.b16 %v2340
    %v2498 = vunpack.c.l.b16 %v2341
    %v2499 = vunpack.c.h.b16 %v2341
    %v2500 = vunpack.c.l.b16 %v2342
    %v2501 = vunpack.c.h.b16 %v2342
    %v2502 = vunpack.c.l.b16 %v2343
    %v2503 = vunpack.c.h.b16 %v2343
    %v2504 = vunpack.c.l.b16 %v2344
    %v2505 = vunpack.c.h.b16 %v2344
    %v2506 = vunpack.c.l.b16 %v2345
    %v2507 = vunpack.c.h.b16 %v2345
    %v2508 = vunpack.c.l.b16 %v2346
    %v2509 = vunpack.c.h.b16 %v2346
    %v2510 = vunpack.c.l.b16 %v2347
    %v2511 = vunpack.c.h.b16 %v2347
    %v2512 = vunpack.c.l.b16 %v2348
    %v2513 = vunpack.c.h.b16 %v2348
    %v2514 = vunpack.c.l.b16 %v2349
    %v2515 = vunpack.c.h.b16 %v2349
    %v2516 = vunpack.c.l.b16 %v2350
    %v2517 = vunpack.c.h.b16 %v2350
    %v2518 = vunpack.c.l.b16 %v2351
    %v2519 = vunpack.c.h.b16 %v2351
    %v2520 = vunpack.c.l.b16 %v2352
    %v2521 = vunpack.c.h.b16 %v2352
    %v2522 = vunpack.c.l.b16 %v2353
    %v2523 = vunpack.c.h.b16 %v2353
    %v2524 = vunpack.c.l.b16 %v2354
    %v2525 = vunpack.c.h.b16 %v2354
    %v2526 = vunpack.c.l.b16 %v2355
    %v2527 = vunpack.c.h.b16 %v2355
    %v2528 = vunpack.c.l.b16 %v2356
    %v2529 = vunpack.c.h.b16 %v2356
    %v2530 = vunpack.c.l.b16 %v2357
    %v2531 = vunpack.c.h.b16 %v2357
    %v2532 = vunpack.c.l.b16 %v2358
    %v2533 = vunpack.c.h.b16 %v2358
    %v2534 = vunpack.c.l.b16 %v2359
    %v2535 = vunpack.c.h.b16 %v2359
    %v2536 = vunpack.c.l.b16 %v2360
    %v2537 = vunpack.c.h.b16 %v2360
    %v2538 = vunpack.c.l.b16 %v2361
    %v2539 = vunpack.c.h.b16 %v2361
    %v2540 = vunpack.c.l.b16 %v2362
    %v2541 = vunpack.c.h.b16 %v2362
    %v2542 = vunpack.c.l.b16 %v2363
    %v2543 = vunpack.c.h.b16 %v2363
    %v2544 = vunpack.c.l.b16 %v2364
    %v2545 = vunpack.c.h.b16 %v2364
    %v2546 = vunpack.c.l.b16 %v2365
    %v2547 = vunpack.c.h.b16 %v2365
    %v2548 = vunpack.c.l.b16 %v2366
    %v2549 = vunpack.c.h.b16 %v2366
    %v2550 = vunpack.c.l.b16 %v2367
    %v2551 = vunpack.c.h.b16 %v2367
    %v2552 = vunpack.c.l.b16 %v2368
    %v2553 = vunpack.c.h.b16 %v2368
    %v2554 = vunpack.c.l.b16 %v2369
    %v2555 = vunpack.c.h.b16 %v2369
    %v2556 = vunpack.c.l.b16 %v2370
    %v2557 = vunpack.c.h.b16 %v2370
    %v2558 = vunpack.c.l.b16 %v2371
    %v2559 = vunpack.c.h.b16 %v2371
    %v2560 = vunpack.c.l.b16 %v2372
    %v2561 = vunpack.c.h.b16 %v2372
    %v2562 = vunpack.c.l.b16 %v2373
    %v2563 = vunpack.c.h.b16 %v2373
    %v2564 = vunpack.c.l.b16 %v2374
    %v2565 = vunpack.c.h.b16 %v2374
    %v2566 = vunpack.c.l.b16 %v2375
    %v2567 = vunpack.c.h.b16 %v2375
    %v2568 = vpack.c.b16 %v2442, %v2440
    %v2569 = vpack.c.b16 %v2443, %v2441
    %v2570 = vpack.c.b16 %v2446, %v2444
    %v2571 = vpack.c.b16 %v2447, %v2445
    %v2572 = vpack.c.b16 %v2450, %v2448
    %v2573 = vpack.c.b16 %v2451, %v2449
    %v2574 = vpack.c.b16 %v2454, %v2452
    %v2575 = vpack.c.b16 %v2455, %v2453
    %v2576 = vpack.c.b16 %v2458, %v2456
    %v2577 = vpack.c.b16 %v2459, %v2457
    %v2578 = vpack.c.b16 %v2462, %v2460
    %v2579 = vpack.c.b16 %v2463, %v2461
    %v2580 = vpack.c.b16 %v2466, %v2464
    %v2581 = vpack.c.b16 %v2467, %v2465
    %v2582 = vpack.c.b16 %v2470, %v2468
    %v2583 = vpack.c.b16 %v2471, %v2469
    %v2584 = vpack.c.b16 %v2474, %v2472
    %v2585 = vpack.c.b16 %v2475, %v2473
    %v2586 = vpack.c.b16 %v2478, %v2476
    %v2587 = vpack.c.b16 %v2479, %v2477
    %v2588 = vpack.c.b16 %v2482, %v2480
    %v2589 = vpack.c.b16 %v2483, %v2481
    %v2590 = vpack.c.b16 %v2486, %v2484
    %v2591 = vpack.c.b16 %v2487, %v2485
    %v2592 = vpack.c.b16 %v2490, %v2488
    %v2593 = vpack.c.b16 %v2491, %v2489
    %v2594 = vpack.c.b16 %v2494, %v2492
    %v2595 = vpack.c.b16 %v2495, %v2493
    %v2596 = vpack.c.b16 %v2498, %v2496
    %v2597 = vpack.c.b16 %v2499, %v2497
    %v2598 = vpack.c.b16 %v2502, %v2500
    %v2599 = vpack.c.b16 %v2503, %v2501
    %v2600 = vpack.c.b16 %v2506, %v2504
    %v2601 = vpack.c.b16 %v2507, %v2505
    %v2602 = vpack.c.b16 %v2510, %v2508
    %v2603 = vpack.c.b16 %v2511, %v2509
    %v2604 = vpack.c.b16 %v2514, %v2512
    %v2605 = vpack.c.b16 %v2515, %v2513
    %v2606 = vpack.c.b16 %v2518, %v2516
    %v2607 = vpack.c.b16 %v2519, %v2517
    %v2608 = vpack.c.b16 %v2522, %v2520
    %v2609 = vpack.c.b16 %v2523, %v2521
    %v2610 = vpack.c.b16 %v2526, %v2524
    %v2611 = vpack.c.b16 %v2527, %v2525
    %v2612 = vpack.c.b16 %v2530, %v2528
    %v2613 = vpack.c.b16 %v2531, %v2529
    %v2614 = vpack.c.b16 %v2534, %v2532
    %v2615 = vpack.c.b16 %v2535, %v2533
    %v2616 = vpack.c.b16 %v2538, %v2536
    %v2617 = vpack.c.b16 %v2539, %v2537
    %v2618 = vpack.c.b16 %v2542, %v2540
    %v2619 = vpack.c.b16 %v2543, %v2541
    %v2620 = vpack.c.b16 %v2546, %v2544
    %v2621 = vpack.c.b16 %v2547, %v2545
    %v2622 = vpack.c.b16 %v2550, %v2548
    %v2623 = vpack.c.b16 %v2551, %v2549
    %v2624 = vpack.c.b16 %v2554, %v2552
    %v2625 = vpack.c.b16 %v2555, %v2553
    %v2626 = vpack.c.b16 %v2558, %v2556
    %v2627 = vpack.c.b16 %v2559, %v2557
    %v2628 = vpack.c.b16 %v2562, %v2560
    %v2629 = vpack.c.b16 %v2563, %v2561
    %v2630 = vpack.c.b16 %v2566, %v2564
    %v2631 = vpack.c.b16 %v2567, %v2565
    %2696 = vmatprep.subr.bf16.mxu0 %v2569
    %2697 = vmatpush1.bf16.msra.mxu0 %v2568
    %2698 = vmatprep.subr.bf16.mxu0 %v2571
    %2699 = vmatpush1.bf16.msra.mxu0 %v2570
    %2700 = vmatprep.subr.bf16.mxu0 %v2573
    %2701 = vmatpush1.bf16.msra.mxu0 %v2572
    %2702 = vmatprep.subr.bf16.mxu0 %v2575
    %2703 = vmatpush1.bf16.msra.mxu0 %v2574
    %2704 = vmatprep.subr.bf16.mxu0 %v2577
    %2705 = vmatpush1.bf16.msra.mxu0 %v2576
    %2706 = vmatprep.subr.bf16.mxu0 %v2579
    %2707 = vmatpush1.bf16.msra.mxu0 %v2578
    %2708 = vmatprep.subr.bf16.mxu0 %v2581
    %2709 = vmatpush1.bf16.msra.mxu0 %v2580
    %2710 = vmatprep.subr.bf16.mxu0 %v2583
    %2711 = vmatpush1.bf16.msra.mxu0 %v2582
    %2712 = vmatprep.subr.bf16.mxu0 %v2585
    %2713 = vmatpush1.bf16.msra.mxu0 %v2584
    %2714 = vmatprep.subr.bf16.mxu0 %v2587
    %2715 = vmatpush1.bf16.msra.mxu0 %v2586
    %2716 = vmatprep.subr.bf16.mxu0 %v2589
    %2717 = vmatpush1.bf16.msra.mxu0 %v2588
    %2718 = vmatprep.subr.bf16.mxu0 %v2591
    %2719 = vmatpush1.bf16.msra.mxu0 %v2590
    %2720 = vmatprep.subr.bf16.mxu0 %v2593
    %2721 = vmatpush1.bf16.msra.mxu0 %v2592
    %2722 = vmatprep.subr.bf16.mxu0 %v2595
    %2723 = vmatpush1.bf16.msra.mxu0 %v2594
    %2724 = vmatprep.subr.bf16.mxu0 %v2597
    %2725 = vmatpush1.bf16.msra.mxu0 %v2596
    %2726 = vmatprep.subr.bf16.mxu0 %v2599
    %2727 = vmatpush1.bf16.msra.mxu0 %v2598
    %2728 = vmatprep.mubr.bf16.mxu0 %v2297
    %2729 = vmatmul.mubr.bf16.gmra.mrb[0].mxu0 %v2296
    %v2730 = vpop.f32.mrb[0].mxu0
    %v2731 = vadd.f32 0.0, %v2730
    %v2732 = vpop.f32.mrb[0].mxu0
    %v2733 = vadd.f32 0.0, %v2732
    %v2734 = vpop.f32.mrb[0].mxu0
    %v2735 = vadd.f32 0.0, %v2734
    %v2736 = vpop.f32.mrb[0].mxu0
    %v2737 = vadd.f32 0.0, %v2736
    %2738 = vmatprep.mubr.bf16.mxu0 %v2301
    %2739 = vmatmul.mubr.bf16.gmra.mrb[0].mxu0 %v2300
    %v2740 = vpop.f32.mrb[0].mxu0
    %v2741 = vadd.f32 0.0, %v2740
    %v2742 = vpop.f32.mrb[0].mxu0
    %v2743 = vadd.f32 0.0, %v2742
    %v2744 = vpop.f32.mrb[0].mxu0
    %v2745 = vadd.f32 0.0, %v2744
    %v2746 = vpop.f32.mrb[0].mxu0
    %v2747 = vadd.f32 0.0, %v2746
    %2748 = vmatprep.mubr.bf16.mxu0 %v2305
    %2749 = vmatmul.mubr.bf16.gmra.mrb[0].mxu0 %v2304
    %v2750 = vpop.f32.mrb[0].mxu0
    %v2751 = vadd.f32 0.0, %v2750
    %v2752 = vpop.f32.mrb[0].mxu0
    %v2753 = vadd.f32 0.0, %v2752
    %v2754 = vpop.f32.mrb[0].mxu0
    %v2755 = vadd.f32 0.0, %v2754
    %v2756 = vpop.f32.mrb[0].mxu0
    %v2757 = vadd.f32 0.0, %v2756
    %2758 = vmatprep.mubr.bf16.mxu0 %v2309
    %2759 = vmatmul.mubr.bf16.gmra.mrb[0].mxu0 %v2308
    %v2760 = vpop.f32.mrb[0].mxu0
    %v2761 = vadd.f32 0.0, %v2760
    %v2762 = vpop.f32.mrb[0].mxu0
    %v2763 = vadd.f32 0.0, %v2762
    %v2764 = vpop.f32.mrb[0].mxu0
    %v2765 = vadd.f32 0.0, %v2764
    %v2766 = vpop.f32.mrb[0].mxu0
    %v2767 = vadd.f32 0.0, %v2766
    %2768 = vdwg.mxu0
    %2769 = vmatprep.subr.bf16.mxu0 %v2601
    %2770 = vmatpush1.bf16.msra.mxu0 %v2600
    %2771 = vmatprep.subr.bf16.mxu0 %v2603
    %2772 = vmatpush1.bf16.msra.mxu0 %v2602
    %2773 = vmatprep.subr.bf16.mxu0 %v2605
    %2774 = vmatpush1.bf16.msra.mxu0 %v2604
    %2775 = vmatprep.subr.bf16.mxu0 %v2607
    %2776 = vmatpush1.bf16.msra.mxu0 %v2606
    %2777 = vmatprep.subr.bf16.mxu0 %v2609
    %2778 = vmatpush1.bf16.msra.mxu0 %v2608
    %2779 = vmatprep.subr.bf16.mxu0 %v2611
    %2780 = vmatpush1.bf16.msra.mxu0 %v2610
    %2781 = vmatprep.subr.bf16.mxu0 %v2613
    %2782 = vmatpush1.bf16.msra.mxu0 %v2612
    %2783 = vmatprep.subr.bf16.mxu0 %v2615
    %2784 = vmatpush1.bf16.msra.mxu0 %v2614
    %2785 = vmatprep.subr.bf16.mxu0 %v2617
    %2786 = vmatpush1.bf16.msra.mxu0 %v2616
    %2787 = vmatprep.subr.bf16.mxu0 %v2619
    %2788 = vmatpush1.bf16.msra.mxu0 %v2618
    %2789 = vmatprep.subr.bf16.mxu0 %v2621
    %2790 = vmatpush1.bf16.msra.mxu0 %v2620
    %2791 = vmatprep.subr.bf16.mxu0 %v2623
    %2792 = vmatpush1.bf16.msra.mxu0 %v2622
    %2793 = vmatprep.subr.bf16.mxu0 %v2625
    %2794 = vmatpush1.bf16.msra.mxu0 %v2624
    %2795 = vmatprep.subr.bf16.mxu0 %v2627
    %2796 = vmatpush1.bf16.msra.mxu0 %v2626
    %2797 = vmatprep.subr.bf16.mxu0 %v2629
    %2798 = vmatpush1.bf16.msra.mxu0 %v2628
    %2799 = vmatprep.subr.bf16.mxu0 %v2631
    %2800 = vmatpush1.bf16.msra.mxu0 %v2630
    %2801 = vmatprep.mubr.bf16.mxu0 %v2299
    %2802 = vmatmul.mubr.bf16.gmra.mrb[0].mxu0 %v2298
    %v2803 = vpop.f32.mrb[0].mxu0
    %v2804 = vadd.f32 %v2731, %v2803
    %v2805 = vpop.f32.mrb[0].mxu0
    %v2806 = vadd.f32 %v2733, %v2805
    %v2807 = vpop.f32.mrb[0].mxu0
    %v2808 = vadd.f32 %v2735, %v2807
    %v2809 = vpop.f32.mrb[0].mxu0
    %v2810 = vadd.f32 %v2737, %v2809
    %2811 = vmatprep.mubr.bf16.mxu0 %v2303
    %2812 = vmatmul.mubr.bf16.gmra.mrb[0].mxu0 %v2302
    %v2813 = vpop.f32.mrb[0].mxu0
    %v2814 = vadd.f32 %v2741, %v2813
    %v2815 = vpop.f32.mrb[0].mxu0
    %v2816 = vadd.f32 %v2743, %v2815
    %v2817 = vpop.f32.mrb[0].mxu0
    %v2818 = vadd.f32 %v2745, %v2817
    %v2819 = vpop.f32.mrb[0].mxu0
    %v2820 = vadd.f32 %v2747, %v2819
    %2821 = vmatprep.mubr.bf16.mxu0 %v2307
    %2822 = vmatmul.mubr.bf16.gmra.mrb[0].mxu0 %v2306
    %v2823 = vpop.f32.mrb[0].mxu0
    %v2824 = vadd.f32 %v2751, %v2823
    %v2825 = vpop.f32.mrb[0].mxu0
    %v2826 = vadd.f32 %v2753, %v2825
    %v2827 = vpop.f32.mrb[0].mxu0
    %v2828 = vadd.f32 %v2755, %v2827
    %v2829 = vpop.f32.mrb[0].mxu0
    %v2830 = vadd.f32 %v2757, %v2829
    %2831 = vmatprep.mubr.bf16.mxu0 %v2311
    %2832 = vmatmul.mubr.bf16.gmra.mrb[0].mxu0 %v2310
    %v2833 = vpop.f32.mrb[0].mxu0
    %v2834 = vadd.f32 %v2761, %v2833
    %v2835 = vpop.f32.mrb[0].mxu0
    %v2836 = vadd.f32 %v2763, %v2835
    %v2837 = vpop.f32.mrb[0].mxu0
    %v2838 = vadd.f32 %v2765, %v2837
    %v2839 = vpop.f32.mrb[0].mxu0
    %v2840 = vadd.f32 %v2767, %v2839
    %2841 = vdwg.mxu0
    %v2842 = vadd.f32 %v2804, %v2808
    %v2843 = vadd.f32 %v2842, %v2814
    %v2844 = vadd.f32 %v2843, %v2818
    %v2845 = vadd.f32 %v2844, %v2824
    %v2846 = vadd.f32 %v2845, %v2828
    %v2847 = vadd.f32 %v2846, %v2834
    %v2848 = vadd.f32 %v2847, %v2838
    %v2849 = vrot.slane %v2848, 4
    %v2850 = vadd.f32 %v2848, %v2849
    %v2851 = vrot.slane %v2850, 2
    %v2852 = vadd.f32 %v2850, %v2851
    %v2853 = vrot.slane %v2852, 1
    %v2854 = vadd.f32 %v2852, %v2853
    %v2855 = vadd.f32 %v2806, %v2810
    %v2856 = vadd.f32 %v2855, %v2816
    %v2857 = vadd.f32 %v2856, %v2820
    %v2858 = vadd.f32 %v2857, %v2826
    %v2859 = vadd.f32 %v2858, %v2830
    %v2860 = vadd.f32 %v2859, %v2836
    %v2861 = vadd.f32 %v2860, %v2840
    %v2862 = vrot.slane %v2861, 4
    %v2863 = vadd.f32 %v2861, %v2862
    %v2864 = vrot.slane %v2863, 2
    %v2865 = vadd.f32 %v2863, %v2864
    %v2866 = vrot.slane %v2865, 1
    %v2867 = vadd.f32 %v2865, %v2866
    %v2868 = vmul.f32 %v2804, %v2804
    %v2869 = vmul.f32 %v2806, %v2806
    %v2870 = vmul.f32 %v2808, %v2808
    %v2871 = vmul.f32 %v2810, %v2810
    %v2872 = vmul.f32 %v2814, %v2814
    %v2873 = vmul.f32 %v2816, %v2816
    %v2874 = vmul.f32 %v2818, %v2818
    %v2875 = vmul.f32 %v2820, %v2820
    %v2876 = vmul.f32 %v2824, %v2824
    %v2877 = vmul.f32 %v2826, %v2826
    %v2878 = vmul.f32 %v2828, %v2828
    %v2879 = vmul.f32 %v2830, %v2830
    %v2880 = vmul.f32 %v2834, %v2834
    %v2881 = vmul.f32 %v2836, %v2836
    %v2882 = vmul.f32 %v2838, %v2838
    %v2883 = vmul.f32 %v2840, %v2840
    %v2884 = vadd.f32 %v2868, %v2870
    %v2885 = vadd.f32 %v2884, %v2872
    %v2886 = vadd.f32 %v2885, %v2874
    %v2887 = vadd.f32 %v2886, %v2876
    %v2888 = vadd.f32 %v2887, %v2878
    %v2889 = vadd.f32 %v2888, %v2880
    %v2890 = vadd.f32 %v2889, %v2882
    %v2891 = vrot.slane %v2890, 4
    %v2892 = vadd.f32 %v2890, %v2891
    %v2893 = vrot.slane %v2892, 2
    %v2894 = vadd.f32 %v2892, %v2893
    %v2895 = vrot.slane %v2894, 1
    %v2896 = vadd.f32 %v2894, %v2895
    %v2897 = vadd.f32 %v2869, %v2871
    %v2898 = vadd.f32 %v2897, %v2873
    %v2899 = vadd.f32 %v2898, %v2875
    %v2900 = vadd.f32 %v2899, %v2877
    %v2901 = vadd.f32 %v2900, %v2879
    %v2902 = vadd.f32 %v2901, %v2881
    %v2903 = vadd.f32 %v2902, %v2883
    %v2904 = vrot.slane %v2903, 4
    %v2905 = vadd.f32 %v2903, %v2904
    %v2906 = vrot.slane %v2905, 2
    %v2907 = vadd.f32 %v2905, %v2906
    %v2908 = vrot.slane %v2907, 1
    %v2909 = vadd.f32 %v2907, %v2908
    %v2910 = vmul.f32 %v2854, 0.015625
    %v2911 = vmul.f32 %v2867, 0.015625
    %v2912 = vmul.f32 %v2896, 0.015625
    %v2913 = vmul.f32 %v2909, 0.015625
    %v2914 = vmul.f32 %v2910, %v2910
    %v2915 = vmul.f32 %v2911, %v2911
    %v2916 = vsub.f32 %v2912, %v2914
    %v2917 = vsub.f32 %v2913, %v2915
    %v2918 = vmax.f32 %v2916, 0.0
    %v2919 = vmax.f32 %v2917, 0.0
    %v2920 = vsub.f32 %v2804, %v2910
    %v2921 = vsub.f32 %v2806, %v2911
    %v2922 = vsub.f32 %v2808, %v2910
    %v2923 = vsub.f32 %v2810, %v2911
    %v2924 = vsub.f32 %v2814, %v2910
    %v2925 = vsub.f32 %v2816, %v2911
    %v2926 = vsub.f32 %v2818, %v2910
    %v2927 = vsub.f32 %v2820, %v2911
    %v2928 = vsub.f32 %v2824, %v2910
    %v2929 = vsub.f32 %v2826, %v2911
    %v2930 = vsub.f32 %v2828, %v2910
    %v2931 = vsub.f32 %v2830, %v2911
    %v2932 = vsub.f32 %v2834, %v2910
    %v2933 = vsub.f32 %v2836, %v2911
    %v2934 = vsub.f32 %v2838, %v2910
    %v2935 = vsub.f32 %v2840, %v2911
    %v2936 = vadd.f32 %v2918, 1e-05
    %v2937 = vadd.f32 %v2919, 1e-05
    %v2938 = vrsqrt.pop %v2936
    %v2939 = vrsqrt.pop %v2937
    %v2940 = vmul.f32 %v2920, %v2938
    %v2941 = vmul.f32 %v2921, %v2939
    %v2942 = vmul.f32 %v2922, %v2938
    %v2943 = vmul.f32 %v2923, %v2939
    %v2944 = vmul.f32 %v2924, %v2938
    %v2945 = vmul.f32 %v2925, %v2939
    %v2946 = vmul.f32 %v2926, %v2938
    %v2947 = vmul.f32 %v2927, %v2939
    %v2948 = vmul.f32 %v2928, %v2938
    %v2949 = vmul.f32 %v2929, %v2939
    %v2950 = vmul.f32 %v2930, %v2938
    %v2951 = vmul.f32 %v2931, %v2939
    %v2952 = vmul.f32 %v2932, %v2938
    %v2953 = vmul.f32 %v2933, %v2939
    %v2954 = vmul.f32 %v2934, %v2938
    %v2955 = vmul.f32 %v2935, %v2939
    %v2956 = vmul.f32 %v2940, 0.2
    %v2957 = vmul.f32 %v2941, 0.2
    %v2958 = vmul.f32 %v2942, 0.2
    %v2959 = vmul.f32 %v2943, 0.2
    %v2960 = vmul.f32 %v2944, 0.2
    %v2961 = vmul.f32 %v2945, 0.2
    %v2962 = vmul.f32 %v2946, 0.2
    %v2963 = vmul.f32 %v2947, 0.2
    %v2964 = vmul.f32 %v2948, 0.2
    %v2965 = vmul.f32 %v2949, 0.2
    %v2966 = vmul.f32 %v2950, 0.2
    %v2967 = vmul.f32 %v2951, 0.2
    %v2968 = vmul.f32 %v2952, 0.2
    %v2969 = vmul.f32 %v2953, 0.2
    %v2970 = vmul.f32 %v2954, 0.2
    %v2971 = vmul.f32 %v2955, 0.2
    %v2972 = vmax.f32 %v2940, %v2956
    %v2973 = vmax.f32 %v2941, %v2957
    %v2974 = vmax.f32 %v2942, %v2958
    %v2975 = vmax.f32 %v2943, %v2959
    %v2976 = vmax.f32 %v2944, %v2960
    %v2977 = vmax.f32 %v2945, %v2961
    %v2978 = vmax.f32 %v2946, %v2962
    %v2979 = vmax.f32 %v2947, %v2963
    %v2980 = vmax.f32 %v2948, %v2964
    %v2981 = vmax.f32 %v2949, %v2965
    %v2982 = vmax.f32 %v2950, %v2966
    %v2983 = vmax.f32 %v2951, %v2967
    %v2984 = vmax.f32 %v2952, %v2968
    %v2985 = vmax.f32 %v2953, %v2969
    %v2986 = vmax.f32 %v2954, %v2970
    %v2987 = vmax.f32 %v2955, %v2971
    %v2988 = vld [vmem:[%s3] sm:$0x3]
    %v2990 = vlaneseq
    %v2991 = vshrl.u32 %v2990, 7
    %v2992 = vsub.s32 0, %v2991
    %v2993 = vrot.slane %v2988, %v2992
    %v2994 = vlaneseq
    %v2995 = vshrl.u32 %v2994, 7
    %v2996 = vsub.s32 1, %v2995
    %v2997 = vrot.slane %v2988, %v2996
    %v3000 = vmul.f32 %v2972, %v2993
    %v3001 = vmul.f32 %v2973, %v2997
    %v3002 = vmul.f32 %v2974, %v2993
    %v3003 = vmul.f32 %v2975, %v2997
    %v3004 = vmul.f32 %v2976, %v2993
    %v3005 = vmul.f32 %v2977, %v2997
    %v3006 = vmul.f32 %v2978, %v2993
    %v3007 = vmul.f32 %v2979, %v2997
    %v3008 = vmul.f32 %v2980, %v2993
    %v3009 = vmul.f32 %v2981, %v2997
    %v3010 = vmul.f32 %v2982, %v2993
    %v3011 = vmul.f32 %v2983, %v2997
    %v3012 = vmul.f32 %v2984, %v2993
    %v3013 = vmul.f32 %v2985, %v2997
    %v3014 = vmul.f32 %v2986, %v2993
    %v3015 = vmul.f32 %v2987, %v2997
    %v3016 = vadd.f32 %v3000, %v3001
    %3017 = vadd.xlane.f32.xlu0 %v3016
    %v3018 = vpop.xlane.xlu0 %3017
    %v3019 = vadd.f32 %v3002, %v3003
    %3020 = vadd.xlane.f32.xlu0 %v3019
    %v3021 = vpop.xlane.xlu0 %3020
    %v3022 = vadd.f32 %v3004, %v3005
    %3023 = vadd.xlane.f32.xlu0 %v3022
    %v3024 = vpop.xlane.xlu0 %3023
    %v3025 = vadd.f32 %v3006, %v3007
    %3026 = vadd.xlane.f32.xlu0 %v3025
    %v3027 = vpop.xlane.xlu0 %3026
    %v3028 = vadd.f32 %v3008, %v3009
    %3029 = vadd.xlane.f32.xlu0 %v3028
    %v3030 = vpop.xlane.xlu0 %3029
    %v3031 = vadd.f32 %v3010, %v3011
    %3032 = vadd.xlane.f32.xlu0 %v3031
    %v3033 = vpop.xlane.xlu0 %3032
    %v3034 = vadd.f32 %v3012, %v3013
    %3035 = vadd.xlane.f32.xlu0 %v3034
    %v3036 = vpop.xlane.xlu0 %3035
    %v3037 = vadd.f32 %v3014, %v3015
    %3038 = vadd.xlane.f32.xlu0 %v3037
    %v3039 = vpop.xlane.xlu0 %3038
    %v3040 = vsub.f32 0.0, %v3018
    %v3041 = vsub.f32 0.0, %v3021
    %v3042 = vsub.f32 0.0, %v3024
    %v3043 = vsub.f32 0.0, %v3027
    %v3044 = vsub.f32 0.0, %v3030
    %v3045 = vsub.f32 0.0, %v3033
    %v3046 = vsub.f32 0.0, %v3036
    %v3047 = vsub.f32 0.0, %v3039
    %v3048 = vmul.f32 %v3040, 1.442695
    %v3049 = vpow.pop %v3048
    %v3050 = vmul.f32 %v3041, 1.442695
    %v3051 = vpow.pop %v3050
    %v3052 = vmul.f32 %v3042, 1.442695
    %v3053 = vpow.pop %v3052
    %v3054 = vmul.f32 %v3043, 1.442695
    %v3055 = vpow.pop %v3054
    %v3056 = vmul.f32 %v3044, 1.442695
    %v3057 = vpow.pop %v3056
    %v3058 = vmul.f32 %v3045, 1.442695
    %v3059 = vpow.pop %v3058
    %v3060 = vmul.f32 %v3046, 1.442695
    %v3061 = vpow.pop %v3060
    %v3062 = vmul.f32 %v3047, 1.442695
    %v3063 = vpow.pop %v3062
    %v3064 = vadd.f32 %v3049, 1.0
    %v3065 = vadd.f32 %v3051, 1.0
    %v3066 = vadd.f32 %v3053, 1.0
    %v3067 = vadd.f32 %v3055, 1.0
    %v3068 = vadd.f32 %v3057, 1.0
    %v3069 = vadd.f32 %v3059, 1.0
    %v3070 = vadd.f32 %v3061, 1.0
    %v3071 = vadd.f32 %v3063, 1.0
    %v3072 = vrcp.pop %v3064
    %v3073 = vmul.f32 1.0, %v3072
    %v3074 = vrcp.pop %v3065
    %v3075 = vmul.f32 1.0, %v3074
    %v3076 = vrcp.pop %v3066
    %v3077 = vmul.f32 1.0, %v3076
    %v3078 = vrcp.pop %v3067
    %v3079 = vmul.f32 1.0, %v3078
    %v3080 = vrcp.pop %v3068
    %v3081 = vmul.f32 1.0, %v3080
    %v3082 = vrcp.pop %v3069
    %v3083 = vmul.f32 1.0, %v3082
    %v3084 = vrcp.pop %v3070
    %v3085 = vmul.f32 1.0, %v3084
    %v3086 = vrcp.pop %v3071
    %v3087 = vmul.f32 1.0, %v3086
    %vm3088 = vcmask 7168
    %3089 = vst.msk [vmem:[%s4] sm:$0xff] %vm3088, %v3073
    %3090 = vst.msk [vmem:[%s4 + $0x8] sm:$0xff] %vm3088, %v3075
    %3091 = vst.msk [vmem:[%s4 + $0x10] sm:$0xff] %vm3088, %v3077
    %3092 = vst.msk [vmem:[%s4 + $0x18] sm:$0xff] %vm3088, %v3079
    %3093 = vst.msk [vmem:[%s4 + $0x20] sm:$0xff] %vm3088, %v3081
    %3094 = vst.msk [vmem:[%s4 + $0x28] sm:$0xff] %vm3088, %v3083
    %3095 = vst.msk [vmem:[%s4 + $0x30] sm:$0xff] %vm3088, %v3085
    %3096 = vst.msk [vmem:[%s4 + $0x38] sm:$0xff] %vm3088, %v3087
    // Predicated region
    $region30: #{tpu_custom_call.1} parent=1 // pred_check
      _
    $region31: #{tpu_custom_call.1} parent=1 // pred_check_branch
      %3098 = sbr.rel (0) target = $region33
    $region32: #{tpu_custom_call.1} parent=1 // pred_region
      _
    $region33: #{tpu_custom_call.1} parent=1 // pred_fallthru
      _
    // Predicated region
    $region34: #{tpu_custom_call.1} parent=1 // pred_check
      _
    $region35: #{tpu_custom_call.1} parent=1 // pred_check_branch
      %3100 = sbr.rel (0) target = $region37
    $region36: #{tpu_custom_call.1} parent=1 // pred_region
      _
    $region37: #{tpu_custom_call.1} parent=1 // pred_fallthru
      _
    %3101 = vsyncpa [#allocation3], 1
    %3102 = vsyncpa [#allocation5], 1

</llo_original>
